<compile_context>
chip_gen: v5e
topology: v5e:2x2
jax: 0.10.0
libtpu: 0.0.40
codegen_flags: <defaults>
</compile_context>

<pallas_src>
import math

import jax
import jax.numpy as jnp
from jax.experimental import pallas as pl
from jax.experimental.pallas import tpu as pltpu

_LANE = 128
_PACK_TARGET = 256          # packed output width target (v6e/v7x 256-wide MXU tile)
_VMEM_BUDGET = 28 * 1024 * 1024


def _round_up(x: int, m: int) -> int:
    return (x + m - 1) // m * m


def _next_pow2(x: int) -> int:
    return 1 << max(3, (x - 1).bit_length())      # at least 8 (sublane multiple)


def _build_hour_table(d_model: int, num_hours: int = 24) -> jnp.ndarray:
    """Deterministic sinusoidal table, mirrors HourEmbedding.__init__.

    (The reference code has `torch.arange()` with no argument; the intended
    construction is `torch.arange(half_dim)`, which is what we implement.)
    """
    assert d_model % 2 == 0, "d_model must be even for interleaved sin/cos"
    half_dim = d_model // 2
    freqs = 2.0 ** (jnp.arange(half_dim, dtype=jnp.float32) / half_dim)      # (half_dim,)
    hours = jnp.arange(num_hours, dtype=jnp.float32)[:, None]                # (num_hours, 1)
    hourly_emb = 2.0 * math.pi * hours * freqs[None, :] / 24.0               # (num_hours, half_dim)
    w = jnp.zeros((num_hours, d_model), dtype=jnp.float32)
    w = w.at[:, 0::2].set(jnp.sin(hourly_emb))
    w = w.at[:, 1::2].set(jnp.cos(hourly_emb))
    return w


def pack_hour_table(table: jnp.ndarray):
    """Build the block-diagonal packed table once (hoist out of the call path).

    Returns (packed_table, P, NH_PAD) where packed_table is (P*NH_PAD, P*d_model).
    """
    num_hours, d_model = table.shape
    if d_model < _PACK_TARGET and _PACK_TARGET % d_model == 0:
        P = _PACK_TARGET // d_model
    elif d_model < _LANE and _LANE % d_model == 0:
        P = _LANE // d_model
    else:
        P = 1   # TODO(synk): lcm(d_model, 128) packing for awkward widths (48, 96, ...)
    NH_PAD = _next_pow2(num_hours)                 # power of two -> shift/mask in kernel
    K, DP = P * NH_PAD, P * d_model
    packed = jnp.zeros((K, DP), jnp.float32)
    tab = table.astype(jnp.float32)
    for p in range(P):
        packed = packed.at[p * NH_PAD: p * NH_PAD + num_hours,
                           p * d_model: (p + 1) * d_model].set(tab)
    return packed, P, NH_PAD


def _hour_embed_kernel(idx_ref, table_ref, out_ref):
    # idx_ref:   (TILE_R, P)         int32   P hour indices packed per row
    # table_ref: (P*NH_PAD, P*D)     float32 block-diagonal sinusoidal table
    # out_ref:   (TILE_R, P*D)       float32 P embeddings packed per row (lane-dense)
    ids = idx_ref[...]                                                   # (TILE_R, P)
    tile_r, p = ids.shape
    k = table_ref.shape[0]                                               # P * NH_PAD
    nh_pad = k // p                                                      # power of two
    shift = nh_pad.bit_length() - 1                                      # static
    mask = nh_pad - 1                                                    # static

    col = jax.lax.broadcasted_iota(jnp.int32, (tile_r, k), 1)            # column index
    hour = col & mask                                                    # hour within block
    slot = col >> shift                                                  # which packed token

    # Scatter each packed token's id across its NH_PAD-wide column block.
    # Initialize from slot 0's ids (saves one full (TILE_R, K) select).
    ids_expand = jnp.broadcast_to(ids[:, 0:1], (tile_r, k))
    for s in range(1, p):                                                # static, p <= 8
        ids_expand = jnp.where(slot == s, ids[:, s:s + 1], ids_expand)

    # Block one-hot: one 1 per (row, slot); padded hour rows (>= num_hours) are zero.
    onehot = (ids_expand == hour).astype(jnp.float32)                    # (TILE_R, K)
    out_ref[...] = jnp.dot(onehot, table_ref[...],
                           preferred_element_type=jnp.float32,
                           precision=jax.lax.Precision.HIGHEST)          # (TILE_R, P*D)


def _choose_tile_rows(R: int, P: int, K: int, DP: int, tile_tokens: int) -> int:
    """Pick rows-per-grid-step: big enough to amortize per-step overhead,
    small enough for VMEM, and >=2 grid steps when there is enough work (v7x)."""
    tile_r = max(8, _round_up(tile_tokens // max(P, 1), 8))
    tile_r = min(tile_r, _round_up(R, 8))
    if R >= 16:                                   # keep >= 2 steps for v7x megacore
        tile_r = min(tile_r, _round_up(-(-R // 2), 8))

    def vmem_bytes(t):
        # double-buffered out + lane-padded idx + one-hot temporaries + table (x2)
        return 4 * (2 * t * DP + 2 * t * _LANE + 4 * t * K + 2 * K * DP)

    while tile_r > 8 and vmem_bytes(tile_r) > _VMEM_BUDGET:
        tile_r = _round_up(tile_r // 2, 8)
    return tile_r


def hour_embedding(hours: jnp.ndarray, table: jnp.ndarray,
                   *, tile_tokens: int = 16384, packed=None) -> jnp.ndarray:
    """hours: (B, S) int -> (B, S, d_model) float32, equivalent to table[hours]."""
    B, S = hours.shape
    num_hours, d_model = table.shape
    N = B * S

    if packed is None:
        packed = pack_hour_table(table)
    packed_table, P, NH_PAD = packed
    K, DP = P * NH_PAD, P * d_model

    # ---- tile the packed-row axis; pad N only if the last tile is ragged ----
    R = -(-N // P)                                             # packed rows needed
    TILE_R = _choose_tile_rows(R, P, K, DP, tile_tokens)
    R_total = _round_up(R, TILE_R)
    N_pad = R_total * P

    idx = hours.reshape(-1).astype(jnp.int32)
    if N_pad != N:
        idx = jnp.zeros((N_pad,), jnp.int32).at[:N].set(idx)   # tail padded with hour 0
    idx = idx.reshape(R_total, P)

    grid = (R_total // TILE_R,)

    out_flat = pl.pallas_call(
        _hour_embed_kernel,
        out_shape=jax.ShapeDtypeStruct((R_total, DP), jnp.float32),
        grid_spec=pltpu.PrefetchScalarGridSpec(
            num_scalar_prefetch=0,
            grid=grid,
            in_specs=[
                pl.BlockSpec((TILE_R, P), lambda i: (i, 0)),      # packed indices
                pl.BlockSpec((K, DP), lambda i: (0, 0)),          # block-diag table
            ],
            out_specs=pl.BlockSpec((TILE_R, DP), lambda i: (i, 0)),
        ),
        compiler_params=pltpu.CompilerParams(
            dimension_semantics=("parallel",),          # megacore sharding on v7x
            vmem_limit_bytes=32 * 1024 * 1024,          # fits v5e/v6e/v7x scoped VMEM
        ),
        cost_estimate=pl.CostEstimate(
            flops=2 * N * NH_PAD * d_model,
            transcendentals=0,
            bytes_accessed=4 * N * d_model + 4 * N + 4 * K * DP,
        ),
    )(idx, packed_table)

    # Packed rows are [emb(t0) | emb(t1) | ...] -> row-major reshape is layout-free.
    out = out_flat.reshape(R_total * P, d_model)
    if N_pad != N:                                   # slice only when padding happened
        out = out[:N]
    return out.reshape(B, S, d_model)


if __name__ == "__main__":
    d_model = 32
    num_hours = 24
    batch, seq = 2, 8

    table = _build_hour_table(d_model, num_hours)
    packed = pack_hour_table(table)                  # hoisted: built once, reused per call

    key = jax.random.PRNGKey(0)
    hours = jax.random.randint(key, (batch, seq), 0, num_hours, dtype=jnp.int32)

    out = hour_embedding(hours, table, packed=packed)
    out = jax.block_until_ready(out)

    # Pure-JAX reference: plain row gather.
    ref = table[hours]
    assert out.shape == (batch, seq, d_model)
    assert out.dtype == jnp.float32
    assert jnp.allclose(out, ref, atol=1e-6), "mismatch vs reference gather"

    print("KERNEL_OK")
</pallas_src>

<mosaic_0001>
module attributes {stable_mosaic.version = 11 : i64} {
  func.func @_hour_embed_kernel(%arg0: i32, %arg1: memref<8x8xi32, #tpu.memory_space<vmem>>, %arg2: memref<256x256xf32, #tpu.memory_space<vmem>>, %arg3: memref<8x256xf32, #tpu.memory_space<vmem>>) attributes {dimension_semantics = [#tpu.dimension_semantics<parallel>], iteration_bounds = array<i64: 1>, scalar_prefetch = 0 : i64, scratch_operands = 0 : i64, tpu.core_type = #tpu.core_type<tc>, window_params = [{transform_indices = @transform_0, window_bounds = array<i64: 8, 8>}, {pipeline_mode = #tpu.pipeline_mode<synchronous>, transform_indices = @transform_1, window_bounds = array<i64: 256, 256>}, {transform_indices = @transform_2, window_bounds = array<i64: 8, 256>}]} {
    %c0 = arith.constant 0 : index
    %c0_0 = arith.constant 0 : index
    %0 = vector.load %arg1[%c0, %c0_0] : memref<8x8xi32, #tpu.memory_space<vmem>>, vector<8x8xi32>
    %1 = tpu.iota {dimensions = array<i32: 1>} : vector<8x256xi32>
    %c31_i32 = arith.constant 31 : i32
    %2 = vector.broadcast %c31_i32 : i32 to vector<8x256xi32>
    %3 = arith.andi %1, %2 : vector<8x256xi32>
    %c5_i32 = arith.constant 5 : i32
    %4 = vector.broadcast %c5_i32 : i32 to vector<8x256xi32>
    %5 = arith.shrsi %1, %4 : vector<8x256xi32>
    %6 = vector.extract_strided_slice %0 {offsets = [0, 0], sizes = [8, 1], strides = [1, 1]} : vector<8x8xi32> to vector<8x1xi32>
    %7 = vector.shape_cast %6 : vector<8x1xi32> to vector<8x1xi32>
    %8 = vector.broadcast %7 : vector<8x1xi32> to vector<8x256xi32>
    %c1_i32 = arith.constant 1 : i32
    %9 = vector.broadcast %c1_i32 : i32 to vector<8x256xi32>
    %10 = arith.cmpi eq, %5, %9 : vector<8x256xi32>
    %11 = vector.extract_strided_slice %0 {offsets = [0, 1], sizes = [8, 1], strides = [1, 1]} : vector<8x8xi32> to vector<8x1xi32>
    %12 = vector.shape_cast %11 : vector<8x1xi32> to vector<8x1xi32>
    %13 = vector.broadcast %12 : vector<8x1xi32> to vector<8x256xi32>
    %14 = arith.select %10, %13, %8 : vector<8x256xi1>, vector<8x256xi32>
    %c2_i32 = arith.constant 2 : i32
    %15 = vector.broadcast %c2_i32 : i32 to vector<8x256xi32>
    %16 = arith.cmpi eq, %5, %15 : vector<8x256xi32>
    %17 = vector.extract_strided_slice %0 {offsets = [0, 2], sizes = [8, 1], strides = [1, 1]} : vector<8x8xi32> to vector<8x1xi32>
    %18 = vector.shape_cast %17 : vector<8x1xi32> to vector<8x1xi32>
    %19 = vector.broadcast %18 : vector<8x1xi32> to vector<8x256xi32>
    %20 = arith.select %16, %19, %14 : vector<8x256xi1>, vector<8x256xi32>
    %c3_i32 = arith.constant 3 : i32
    %21 = vector.broadcast %c3_i32 : i32 to vector<8x256xi32>
    %22 = arith.cmpi eq, %5, %21 : vector<8x256xi32>
    %23 = vector.extract_strided_slice %0 {offsets = [0, 3], sizes = [8, 1], strides = [1, 1]} : vector<8x8xi32> to vector<8x1xi32>
    %24 = vector.shape_cast %23 : vector<8x1xi32> to vector<8x1xi32>
    %25 = vector.broadcast %24 : vector<8x1xi32> to vector<8x256xi32>
    %26 = arith.select %22, %25, %20 : vector<8x256xi1>, vector<8x256xi32>
    %c4_i32 = arith.constant 4 : i32
    %27 = vector.broadcast %c4_i32 : i32 to vector<8x256xi32>
    %28 = arith.cmpi eq, %5, %27 : vector<8x256xi32>
    %29 = vector.extract_strided_slice %0 {offsets = [0, 4], sizes = [8, 1], strides = [1, 1]} : vector<8x8xi32> to vector<8x1xi32>
    %30 = vector.shape_cast %29 : vector<8x1xi32> to vector<8x1xi32>
    %31 = vector.broadcast %30 : vector<8x1xi32> to vector<8x256xi32>
    %32 = arith.select %28, %31, %26 : vector<8x256xi1>, vector<8x256xi32>
    %c5_i32_1 = arith.constant 5 : i32
    %33 = vector.broadcast %c5_i32_1 : i32 to vector<8x256xi32>
    %34 = arith.cmpi eq, %5, %33 : vector<8x256xi32>
    %35 = vector.extract_strided_slice %0 {offsets = [0, 5], sizes = [8, 1], strides = [1, 1]} : vector<8x8xi32> to vector<8x1xi32>
    %36 = vector.shape_cast %35 : vector<8x1xi32> to vector<8x1xi32>
    %37 = vector.broadcast %36 : vector<8x1xi32> to vector<8x256xi32>
    %38 = arith.select %34, %37, %32 : vector<8x256xi1>, vector<8x256xi32>
    %c6_i32 = arith.constant 6 : i32
    %39 = vector.broadcast %c6_i32 : i32 to vector<8x256xi32>
    %40 = arith.cmpi eq, %5, %39 : vector<8x256xi32>
    %41 = vector.extract_strided_slice %0 {offsets = [0, 6], sizes = [8, 1], strides = [1, 1]} : vector<8x8xi32> to vector<8x1xi32>
    %42 = vector.shape_cast %41 : vector<8x1xi32> to vector<8x1xi32>
    %43 = vector.broadcast %42 : vector<8x1xi32> to vector<8x256xi32>
    %44 = arith.select %40, %43, %38 : vector<8x256xi1>, vector<8x256xi32>
    %c7_i32 = arith.constant 7 : i32
    %45 = vector.broadcast %c7_i32 : i32 to vector<8x256xi32>
    %46 = arith.cmpi eq, %5, %45 : vector<8x256xi32>
    %47 = vector.extract_strided_slice %0 {offsets = [0, 7], sizes = [8, 1], strides = [1, 1]} : vector<8x8xi32> to vector<8x1xi32>
    %48 = vector.shape_cast %47 : vector<8x1xi32> to vector<8x1xi32>
    %49 = vector.broadcast %48 : vector<8x1xi32> to vector<8x256xi32>
    %50 = arith.select %46, %49, %44 : vector<8x256xi1>, vector<8x256xi32>
    %51 = arith.cmpi eq, %50, %3 : vector<8x256xi32>
    %52 = arith.extui %51 : vector<8x256xi1> to vector<8x256xi32>
    %53 = arith.sitofp %52 : vector<8x256xi32> to vector<8x256xf32>
    %c0_2 = arith.constant 0 : index
    %c0_3 = arith.constant 0 : index
    %54 = vector.load %arg2[%c0_2, %c0_3] : memref<256x256xf32, #tpu.memory_space<vmem>>, vector<256x256xf32>
    %cst = arith.constant dense<0.000000e+00> : vector<8x256xf32>
    %55 = tpu.matmul %53, %54, %cst {dimension_numbers = #tpu.dot_dimension_numbers<[1], [0], [0], [1], [0, 0, 1, 1], [], []>, precision = #tpu.contract_precision<fp32>} : vector<8x256xf32>, vector<256x256xf32>, vector<8x256xf32> -> vector<8x256xf32>
    %c0_4 = arith.constant 0 : index
    %c0_5 = arith.constant 0 : index
    %56 = vector.load %arg3[%c0_4, %c0_5] : memref<8x256xf32, #tpu.memory_space<vmem>>, vector<8x256xf32>
    tpu.vector_store %arg3[%c0_4, %c0_5], %55 {strides = array<i32>} : memref<8x256xf32, #tpu.memory_space<vmem>>, vector<8x256xf32>,
    return
  }
  func.func @transform_0(%arg0: i32) -> (i32, i32) {
    %c0_i32 = arith.constant 0 : i32
    %c0_i32_0 = arith.constant 0 : i32
    return %arg0, %c0_i32 : i32, i32
  }
  func.func @transform_1(%arg0: i32) -> (i32, i32) {
    %c0_i32 = arith.constant 0 : i32
    %c0_i32_0 = arith.constant 0 : i32
    %c0_i32_1 = arith.constant 0 : i32
    return %c0_i32, %c0_i32_0 : i32, i32
  }
  func.func @transform_2(%arg0: i32) -> (i32, i32) {
    %c0_i32 = arith.constant 0 : i32
    %c0_i32_0 = arith.constant 0 : i32
    return %arg0, %c0_i32 : i32, i32
  }
}

</mosaic_0001>

<llo_original>
// kernel: tpu_custom_call.1
$region0: #{tpu_custom_call.1}
  #allocation0 [shape = 'u32[]', space=smem, size = 0x4, offset = 0x4, fixed_abs, tag = 'smem constant byte address 0x4 - core index']
  #allocation1 [shape = 'u32[72,128]{1,0:T(1,128)}', space=vmem, size = 0x9000, scoped, tag = 'internal scratch']
  %s0 = inlined_call_operand.hbm [shape: s32[8,8], index: 0, kind: input, shape index: {}]
  %s1 = inlined_call_operand.hbm [shape: f32[256,256], index: 1, kind: input, shape index: {}]
  %s2 = inlined_call_operand.hbm [shape: f32[8,256], index: 2, kind: output, shape index: {}]
  %s3 = sld [smem:[#allocation0]]
  $region26: #{tpu_custom_call.1} parent=0
    _
  %s5 = ssub.s32 1, %s3
  %s6 = scalar_select 0, %s5, %s3
  $region1: #{tpu_custom_call.1} parent=0
    #allocation2 [shape = 'u8[4096]{0}', space=vmem, size = 0x1000, scoped, tag = 'input window, operand 0, single buffered']
    #allocation3 [shape = 's32[1]{0}', space=sflag, size = 0x4, scoped, tag = 'scoped memory for tpu_custom_call.1']
    #allocation4 [shape = 's32[1]{0}', space=sflag, size = 0x4, scoped, tag = 'scoped memory for tpu_custom_call.1']
    #allocation5 [shape = 'u8[262144]{0}', space=vmem, size = 0x40000, scoped, tag = 'input window, operand 1, single buffered']
    #allocation6 [shape = 's32[1]{0}', space=sflag, size = 0x4, scoped, tag = 'scoped memory for tpu_custom_call.1']
    #allocation7 [shape = 'u8[8192]{0}', space=vmem, size = 0x2000, scoped, tag = 'output window, operand 0, single buffered']
    %7 = vsyncpa [#allocation3], 0
    %8 = vsyncpa [#allocation6], 0
    %9 = vsyncpa [#allocation4], 0
    // Predicated region
    $region2: #{tpu_custom_call.1} parent=1 // pred_check
      _
    $region3: #{tpu_custom_call.1} parent=1 // pred_check_branch
      %11 = sbr.rel (0) target = $region5
    $region4: #{tpu_custom_call.1} parent=1 // pred_region
      %13 = vsyncadd [#allocation3], 0
      %s15 = sshll.u32 %s0, 4
      %s16 = int_to_ptr.hbm [resolvable:$true] %s15
      %s17 = sshll.u32 [#allocation2], 4
      %s18 = int_to_ptr.vmem [resolvable:$true] %s17
      %20 = dma.hbm_to_vmem [thread:$0]  %s16, 128, %s18, [#allocation3]
    $region5: #{tpu_custom_call.1} parent=1 // pred_fallthru
      _
    // Predicated region
    $region6: #{tpu_custom_call.1} parent=1 // pred_check
      _
    $region7: #{tpu_custom_call.1} parent=1 // pred_check_branch
      %22 = sbr.rel (0) target = $region9
    $region8: #{tpu_custom_call.1} parent=1 // pred_region
      %24 = vsyncadd [#allocation6], 0
      %s25 = sshll.u32 %s1, 4
      %s26 = int_to_ptr.hbm [resolvable:$true] %s25
      %s27 = sshll.u32 [#allocation5], 4
      %s28 = int_to_ptr.vmem [resolvable:$true] %s27
      %33 = dma.hbm_to_vmem [thread:$0]  %s26, 8192, %s28, [#allocation6], 256, 256, 16
    $region9: #{tpu_custom_call.1} parent=1 // pred_fallthru
      _
    // Predicated region
    $region10: #{tpu_custom_call.1} parent=1 // pred_check
      _
    $region11: #{tpu_custom_call.1} parent=1 // pred_check_branch
      %35 = sbr.rel (0) target = $region13
    $region12: #{tpu_custom_call.1} parent=1 // pred_region
      %37 = dma.done [#allocation3], 128
    $region13: #{tpu_custom_call.1} parent=1 // pred_fallthru
      _
    // Predicated region
    $region14: #{tpu_custom_call.1} parent=1 // pred_check
      _
    $region15: #{tpu_custom_call.1} parent=1 // pred_check_branch
      %39 = sbr.rel (0) target = $region17
    $region16: #{tpu_custom_call.1} parent=1 // pred_region
      %41 = dma.done [#allocation6], 8192
    $region17: #{tpu_custom_call.1} parent=1 // pred_fallthru
      _
    %v42 = vld [vmem:[#allocation2] sm:$0xff]
    %v43 = vlaneseq
    %v44 = vand.u32 %v43, 127
    %v45 = vadd.s32 %v44, 128
    %v46 = vand.u32 %v44, 31
    %v47 = vand.u32 %v45, 31
    %v48 = vshra.s32 %v44, 5
    %v49 = vshra.s32 %v45, 5
    %50 = vset.pattern.permute.xlu0 0
    %51 = vperm.xlu0 %50, %v42
    %v52 = vpop.permute.xlu0 %51
    %vm53 = vcmp.eq.s32.totalorder %v48, 1
    %vm54 = vcmp.eq.s32.totalorder %v49, 1
    %55 = vset.pattern.permute.xlu0 1
    %56 = vperm.xlu0 %55, %v42
    %v57 = vpop.permute.xlu0 %56
    %v58 = vsel %vm53, %v57, %v52
    %v59 = vsel %vm54, %v57, %v52
    %vm60 = vcmp.eq.s32.totalorder %v48, 2
    %vm61 = vcmp.eq.s32.totalorder %v49, 2
    %62 = vset.pattern.permute.xlu0 2
    %63 = vperm.xlu0 %62, %v42
    %v64 = vpop.permute.xlu0 %63
    %v65 = vsel %vm60, %v64, %v58
    %v66 = vsel %vm61, %v64, %v59
    %vm67 = vcmp.eq.s32.totalorder %v48, 3
    %vm68 = vcmp.eq.s32.totalorder %v49, 3
    %69 = vset.pattern.permute.xlu0 3
    %70 = vperm.xlu0 %69, %v42
    %v71 = vpop.permute.xlu0 %70
    %v72 = vsel %vm67, %v71, %v65
    %v73 = vsel %vm68, %v71, %v66
    %vm74 = vcmp.eq.s32.totalorder %v48, 4
    %vm75 = vcmp.eq.s32.totalorder %v49, 4
    %76 = vset.pattern.permute.xlu0 4
    %77 = vperm.xlu0 %76, %v42
    %v78 = vpop.permute.xlu0 %77
    %v79 = vsel %vm74, %v78, %v72
    %v80 = vsel %vm75, %v78, %v73
    %vm81 = vcmp.eq.s32.totalorder %v48, 5
    %vm82 = vcmp.eq.s32.totalorder %v49, 5
    %83 = vset.pattern.permute.xlu0 5
    %84 = vperm.xlu0 %83, %v42
    %v85 = vpop.permute.xlu0 %84
    %v86 = vsel %vm81, %v85, %v79
    %v87 = vsel %vm82, %v85, %v80
    %vm88 = vcmp.eq.s32.totalorder %v48, 6
    %vm89 = vcmp.eq.s32.totalorder %v49, 6
    %90 = vset.pattern.permute.xlu0 6
    %91 = vperm.xlu0 %90, %v42
    %v92 = vpop.permute.xlu0 %91
    %v93 = vsel %vm88, %v92, %v86
    %v94 = vsel %vm89, %v92, %v87
    %vm95 = vcmp.eq.s32.totalorder %v48, 7
    %vm96 = vcmp.eq.s32.totalorder %v49, 7
    %97 = vset.pattern.permute.xlu0 7
    %98 = vperm.xlu0 %97, %v42
    %v99 = vpop.permute.xlu0 %98
    %v100 = vsel %vm95, %v99, %v93
    %v101 = vsel %vm96, %v99, %v94
    %vm102 = vcmp.eq.s32.totalorder %v100, %v46
    %vm103 = vcmp.eq.s32.totalorder %v101, %v47
    %v104 = vsel %vm102, 1, 0
    %v105 = vsel %vm103, 1, 0
    %v106 = vcvt.s32.f32 %v104
    %v107 = vcvt.s32.f32 %v105
    %v108 = vld [vmem:[#allocation5] sm:$0xff]
    %v109 = vld [vmem:[#allocation5 + $0x8] sm:$0xff]
    %v110 = vld [vmem:[#allocation5 + $0x10] sm:$0xff]
    %v111 = vld [vmem:[#allocation5 + $0x18] sm:$0xff]
    %v112 = vld [vmem:[#allocation5 + $0x20] sm:$0xff]
    %v113 = vld [vmem:[#allocation5 + $0x28] sm:$0xff]
    %v114 = vld [vmem:[#allocation5 + $0x30] sm:$0xff]
    %v115 = vld [vmem:[#allocation5 + $0x38] sm:$0xff]
    %v116 = vld [vmem:[#allocation5 + $0x40] sm:$0xff]
    %v117 = vld [vmem:[#allocation5 + $0x48] sm:$0xff]
    %v118 = vld [vmem:[#allocation5 + $0x50] sm:$0xff]
    %v119 = vld [vmem:[#allocation5 + $0x58] sm:$0xff]
    %v120 = vld [vmem:[#allocation5 + $0x60] sm:$0xff]
    %v121 = vld [vmem:[#allocation5 + $0x68] sm:$0xff]
    %v122 = vld [vmem:[#allocation5 + $0x70] sm:$0xff]
    %v123 = vld [vmem:[#allocation5 + $0x78] sm:$0xff]
    %v124 = vld [vmem:[#allocation5 + $0x80] sm:$0xff]
    %v125 = vld [vmem:[#allocation5 + $0x88] sm:$0xff]
    %v126 = vld [vmem:[#allocation5 + $0x90] sm:$0xff]
    %v127 = vld [vmem:[#allocation5 + $0x98] sm:$0xff]
    %v128 = vld [vmem:[#allocation5 + $0xa0] sm:$0xff]
    %v129 = vld [vmem:[#allocation5 + $0xa8] sm:$0xff]
    %v130 = vld [vmem:[#allocation5 + $0xb0] sm:$0xff]
    %v131 = vld [vmem:[#allocation5 + $0xb8] sm:$0xff]
    %v132 = vld [vmem:[#allocation5 + $0xc0] sm:$0xff]
    %v133 = vld [vmem:[#allocation5 + $0xc8] sm:$0xff]
    %v134 = vld [vmem:[#allocation5 + $0xd0] sm:$0xff]
    %v135 = vld [vmem:[#allocation5 + $0xd8] sm:$0xff]
    %v136 = vld [vmem:[#allocation5 + $0xe0] sm:$0xff]
    %v137 = vld [vmem:[#allocation5 + $0xe8] sm:$0xff]
    %v138 = vld [vmem:[#allocation5 + $0xf0] sm:$0xff]
    %v139 = vld [vmem:[#allocation5 + $0xf8] sm:$0xff]
    %v140 = vld [vmem:[#allocation5 + $0x100] sm:$0xff]
    %v141 = vld [vmem:[#allocation5 + $0x108] sm:$0xff]
    %v142 = vld [vmem:[#allocation5 + $0x110] sm:$0xff]
    %v143 = vld [vmem:[#allocation5 + $0x118] sm:$0xff]
    %v144 = vld [vmem:[#allocation5 + $0x120] sm:$0xff]
    %v145 = vld [vmem:[#allocation5 + $0x128] sm:$0xff]
    %v146 = vld [vmem:[#allocation5 + $0x130] sm:$0xff]
    %v147 = vld [vmem:[#allocation5 + $0x138] sm:$0xff]
    %v148 = vld [vmem:[#allocation5 + $0x140] sm:$0xff]
    %v149 = vld [vmem:[#allocation5 + $0x148] sm:$0xff]
    %v150 = vld [vmem:[#allocation5 + $0x150] sm:$0xff]
    %v151 = vld [vmem:[#allocation5 + $0x158] sm:$0xff]
    %v152 = vld [vmem:[#allocation5 + $0x160] sm:$0xff]
    %v153 = vld [vmem:[#allocation5 + $0x168] sm:$0xff]
    %v154 = vld [vmem:[#allocation5 + $0x170] sm:$0xff]
    %v155 = vld [vmem:[#allocation5 + $0x178] sm:$0xff]
    %v156 = vld [vmem:[#allocation5 + $0x180] sm:$0xff]
    %v157 = vld [vmem:[#allocation5 + $0x188] sm:$0xff]
    %v158 = vld [vmem:[#allocation5 + $0x190] sm:$0xff]
    %v159 = vld [vmem:[#allocation5 + $0x198] sm:$0xff]
    %v160 = vld [vmem:[#allocation5 + $0x1a0] sm:$0xff]
    %v161 = vld [vmem:[#allocation5 + $0x1a8] sm:$0xff]
    %v162 = vld [vmem:[#allocation5 + $0x1b0] sm:$0xff]
    %v163 = vld [vmem:[#allocation5 + $0x1b8] sm:$0xff]
    %v164 = vld [vmem:[#allocation5 + $0x1c0] sm:$0xff]
    %v165 = vld [vmem:[#allocation5 + $0x1c8] sm:$0xff]
    %v166 = vld [vmem:[#allocation5 + $0x1d0] sm:$0xff]
    %v167 = vld [vmem:[#allocation5 + $0x1d8] sm:$0xff]
    %v168 = vld [vmem:[#allocation5 + $0x1e0] sm:$0xff]
    %v169 = vld [vmem:[#allocation5 + $0x1e8] sm:$0xff]
    %v170 = vld [vmem:[#allocation5 + $0x1f0] sm:$0xff]
    %v171 = vld [vmem:[#allocation5 + $0x1f8] sm:$0xff]
    %v172 = vand.u32 %v138, 4294901760
    %173 = vmatpush.msra.mxu0 %v172
    %v174 = vand.u32 %v136, 4294901760
    %175 = vmatpush.msra.mxu0 %v174
    %v176 = vand.u32 %v134, 4294901760
    %177 = vmatpush.msra.mxu0 %v176
    %v178 = vand.u32 %v132, 4294901760
    %179 = vmatpush.msra.mxu0 %v178
    %v180 = vand.u32 %v130, 4294901760
    %181 = vmatpush.msra.mxu0 %v180
    %v182 = vand.u32 %v128, 4294901760
    %183 = vmatpush.msra.mxu0 %v182
    %v184 = vand.u32 %v126, 4294901760
    %185 = vmatpush.msra.mxu0 %v184
    %v186 = vand.u32 %v124, 4294901760
    %187 = vmatpush.msra.mxu0 %v186
    %v188 = vand.u32 %v122, 4294901760
    %189 = vmatpush.msra.mxu0 %v188
    %v190 = vand.u32 %v120, 4294901760
    %191 = vmatpush.msra.mxu0 %v190
    %v192 = vand.u32 %v118, 4294901760
    %193 = vmatpush.msra.mxu0 %v192
    %v194 = vand.u32 %v116, 4294901760
    %195 = vmatpush.msra.mxu0 %v194
    %v196 = vand.u32 %v114, 4294901760
    %197 = vmatpush.msra.mxu0 %v196
    %v198 = vand.u32 %v112, 4294901760
    %199 = vmatpush.msra.mxu0 %v198
    %v200 = vand.u32 %v110, 4294901760
    %201 = vmatpush.msra.mxu0 %v200
    %v202 = vand.u32 %v108, 4294901760
    %203 = vmatpush.msra.mxu0 %v202
    %v204 = vand.u32 %v106, 4294901760
    %v205 = vsub.f32 %v106, %v204
    %v206 = vand.u32 %v205, 4294901760
    %v207 = vsub.f32 %v205, %v206
    %v208 = vand.u32 %v207, 4294901760
    %209 = vmatmul.f32.gmra.mxu0 %v208
    %v210 = vpop.f32.mrf.mxu0
    %v211 = vadd.f32 0.0, %v210
    %212 = vdwg.mxu0
    %v213 = vand.u32 %v138, 4294901760
    %v214 = vsub.f32 %v138, %v213
    %v215 = vand.u32 %v214, 4294901760
    %v216 = vsub.f32 %v214, %v215
    %v217 = vand.u32 %v216, 4294901760
    %218 = vmatpush.msra.mxu0 %v217
    %v219 = vand.u32 %v136, 4294901760
    %v220 = vsub.f32 %v136, %v219
    %v221 = vand.u32 %v220, 4294901760
    %v222 = vsub.f32 %v220, %v221
    %v223 = vand.u32 %v222, 4294901760
    %224 = vmatpush.msra.mxu0 %v223
    %v225 = vand.u32 %v134, 4294901760
    %v226 = vsub.f32 %v134, %v225
    %v227 = vand.u32 %v226, 4294901760
    %v228 = vsub.f32 %v226, %v227
    %v229 = vand.u32 %v228, 4294901760
    %230 = vmatpush.msra.mxu0 %v229
    %v231 = vand.u32 %v132, 4294901760
    %v232 = vsub.f32 %v132, %v231
    %v233 = vand.u32 %v232, 4294901760
    %v234 = vsub.f32 %v232, %v233
    %v235 = vand.u32 %v234, 4294901760
    %236 = vmatpush.msra.mxu0 %v235
    %v237 = vand.u32 %v130, 4294901760
    %v238 = vsub.f32 %v130, %v237
    %v239 = vand.u32 %v238, 4294901760
    %v240 = vsub.f32 %v238, %v239
    %v241 = vand.u32 %v240, 4294901760
    %242 = vmatpush.msra.mxu0 %v241
    %v243 = vand.u32 %v128, 4294901760
    %v244 = vsub.f32 %v128, %v243
    %v245 = vand.u32 %v244, 4294901760
    %v246 = vsub.f32 %v244, %v245
    %v247 = vand.u32 %v246, 4294901760
    %248 = vmatpush.msra.mxu0 %v247
    %v249 = vand.u32 %v126, 4294901760
    %v250 = vsub.f32 %v126, %v249
    %v251 = vand.u32 %v250, 4294901760
    %v252 = vsub.f32 %v250, %v251
    %v253 = vand.u32 %v252, 4294901760
    %254 = vmatpush.msra.mxu0 %v253
    %v255 = vand.u32 %v124, 4294901760
    %v256 = vsub.f32 %v124, %v255
    %v257 = vand.u32 %v256, 4294901760
    %v258 = vsub.f32 %v256, %v257
    %v259 = vand.u32 %v258, 4294901760
    %260 = vmatpush.msra.mxu0 %v259
    %v261 = vand.u32 %v122, 4294901760
    %v262 = vsub.f32 %v122, %v261
    %v263 = vand.u32 %v262, 4294901760
    %v264 = vsub.f32 %v262, %v263
    %v265 = vand.u32 %v264, 4294901760
    %266 = vmatpush.msra.mxu0 %v265
    %v267 = vand.u32 %v120, 4294901760
    %v268 = vsub.f32 %v120, %v267
    %v269 = vand.u32 %v268, 4294901760
    %v270 = vsub.f32 %v268, %v269
    %v271 = vand.u32 %v270, 4294901760
    %272 = vmatpush.msra.mxu0 %v271
    %v273 = vand.u32 %v118, 4294901760
    %v274 = vsub.f32 %v118, %v273
    %v275 = vand.u32 %v274, 4294901760
    %v276 = vsub.f32 %v274, %v275
    %v277 = vand.u32 %v276, 4294901760
    %278 = vmatpush.msra.mxu0 %v277
    %v279 = vand.u32 %v116, 4294901760
    %v280 = vsub.f32 %v116, %v279
    %v281 = vand.u32 %v280, 4294901760
    %v282 = vsub.f32 %v280, %v281
    %v283 = vand.u32 %v282, 4294901760
    %284 = vmatpush.msra.mxu0 %v283
    %v285 = vand.u32 %v114, 4294901760
    %v286 = vsub.f32 %v114, %v285
    %v287 = vand.u32 %v286, 4294901760
    %v288 = vsub.f32 %v286, %v287
    %v289 = vand.u32 %v288, 4294901760
    %290 = vmatpush.msra.mxu0 %v289
    %v291 = vand.u32 %v112, 4294901760
    %v292 = vsub.f32 %v112, %v291
    %v293 = vand.u32 %v292, 4294901760
    %v294 = vsub.f32 %v292, %v293
    %v295 = vand.u32 %v294, 4294901760
    %296 = vmatpush.msra.mxu0 %v295
    %v297 = vand.u32 %v110, 4294901760
    %v298 = vsub.f32 %v110, %v297
    %v299 = vand.u32 %v298, 4294901760
    %v300 = vsub.f32 %v298, %v299
    %v301 = vand.u32 %v300, 4294901760
    %302 = vmatpush.msra.mxu0 %v301
    %v303 = vand.u32 %v108, 4294901760
    %v304 = vsub.f32 %v108, %v303
    %v305 = vand.u32 %v304, 4294901760
    %v306 = vsub.f32 %v304, %v305
    %v307 = vand.u32 %v306, 4294901760
    %308 = vmatpush.msra.mxu0 %v307
    %v309 = vand.u32 %v106, 4294901760
    %310 = vmatmul.f32.gmra.mxu0 %v309
    %v311 = vpop.f32.mrf.mxu0
    %v312 = vadd.f32 %v211, %v311
    %313 = vdwg.mxu0
    %v314 = vand.u32 %v138, 4294901760
    %v315 = vsub.f32 %v138, %v314
    %316 = vmatpush.msra.mxu0 %v315
    %v317 = vand.u32 %v136, 4294901760
    %v318 = vsub.f32 %v136, %v317
    %319 = vmatpush.msra.mxu0 %v318
    %v320 = vand.u32 %v134, 4294901760
    %v321 = vsub.f32 %v134, %v320
    %322 = vmatpush.msra.mxu0 %v321
    %v323 = vand.u32 %v132, 4294901760
    %v324 = vsub.f32 %v132, %v323
    %325 = vmatpush.msra.mxu0 %v324
    %v326 = vand.u32 %v130, 4294901760
    %v327 = vsub.f32 %v130, %v326
    %328 = vmatpush.msra.mxu0 %v327
    %v329 = vand.u32 %v128, 4294901760
    %v330 = vsub.f32 %v128, %v329
    %331 = vmatpush.msra.mxu0 %v330
    %v332 = vand.u32 %v126, 4294901760
    %v333 = vsub.f32 %v126, %v332
    %334 = vmatpush.msra.mxu0 %v333
    %v335 = vand.u32 %v124, 4294901760
    %v336 = vsub.f32 %v124, %v335
    %337 = vmatpush.msra.mxu0 %v336
    %v338 = vand.u32 %v122, 4294901760
    %v339 = vsub.f32 %v122, %v338
    %340 = vmatpush.msra.mxu0 %v339
    %v341 = vand.u32 %v120, 4294901760
    %v342 = vsub.f32 %v120, %v341
    %343 = vmatpush.msra.mxu0 %v342
    %v344 = vand.u32 %v118, 4294901760
    %v345 = vsub.f32 %v118, %v344
    %346 = vmatpush.msra.mxu0 %v345
    %v347 = vand.u32 %v116, 4294901760
    %v348 = vsub.f32 %v116, %v347
    %349 = vmatpush.msra.mxu0 %v348
    %v350 = vand.u32 %v114, 4294901760
    %v351 = vsub.f32 %v114, %v350
    %352 = vmatpush.msra.mxu0 %v351
    %v353 = vand.u32 %v112, 4294901760
    %v354 = vsub.f32 %v112, %v353
    %355 = vmatpush.msra.mxu0 %v354
    %v356 = vand.u32 %v110, 4294901760
    %v357 = vsub.f32 %v110, %v356
    %358 = vmatpush.msra.mxu0 %v357
    %v359 = vand.u32 %v108, 4294901760
    %v360 = vsub.f32 %v108, %v359
    %361 = vmatpush.msra.mxu0 %v360
    %v362 = vand.u32 %v106, 4294901760
    %v363 = vsub.f32 %v106, %v362
    %364 = vmatmul.f32.gmra.mxu0 %v363
    %v365 = vpop.f32.mrf.mxu0
    %v366 = vadd.f32 %v312, %v365
    %367 = vdwg.mxu0
    %v368 = vand.u32 %v138, 4294901760
    %369 = vmatpush.msra.mxu0 %v368
    %v370 = vand.u32 %v136, 4294901760
    %371 = vmatpush.msra.mxu0 %v370
    %v372 = vand.u32 %v134, 4294901760
    %373 = vmatpush.msra.mxu0 %v372
    %v374 = vand.u32 %v132, 4294901760
    %375 = vmatpush.msra.mxu0 %v374
    %v376 = vand.u32 %v130, 4294901760
    %377 = vmatpush.msra.mxu0 %v376
    %v378 = vand.u32 %v128, 4294901760
    %379 = vmatpush.msra.mxu0 %v378
    %v380 = vand.u32 %v126, 4294901760
    %381 = vmatpush.msra.mxu0 %v380
    %v382 = vand.u32 %v124, 4294901760
    %383 = vmatpush.msra.mxu0 %v382
    %v384 = vand.u32 %v122, 4294901760
    %385 = vmatpush.msra.mxu0 %v384
    %v386 = vand.u32 %v120, 4294901760
    %387 = vmatpush.msra.mxu0 %v386
    %v388 = vand.u32 %v118, 4294901760
    %389 = vmatpush.msra.mxu0 %v388
    %v390 = vand.u32 %v116, 4294901760
    %391 = vmatpush.msra.mxu0 %v390
    %v392 = vand.u32 %v114, 4294901760
    %393 = vmatpush.msra.mxu0 %v392
    %v394 = vand.u32 %v112, 4294901760
    %395 = vmatpush.msra.mxu0 %v394
    %v396 = vand.u32 %v110, 4294901760
    %397 = vmatpush.msra.mxu0 %v396
    %v398 = vand.u32 %v108, 4294901760
    %399 = vmatpush.msra.mxu0 %v398
    %v400 = vand.u32 %v106, 4294901760
    %v401 = vsub.f32 %v106, %v400
    %v402 = vand.u32 %v401, 4294901760
    %403 = vmatmul.f32.gmra.mxu0 %v402
    %v404 = vpop.f32.mrf.mxu0
    %v405 = vadd.f32 %v366, %v404
    %406 = vdwg.mxu0
    %v407 = vand.u32 %v138, 4294901760
    %v408 = vsub.f32 %v138, %v407
    %v409 = vand.u32 %v408, 4294901760
    %410 = vmatpush.msra.mxu0 %v409
    %v411 = vand.u32 %v136, 4294901760
    %v412 = vsub.f32 %v136, %v411
    %v413 = vand.u32 %v412, 4294901760
    %414 = vmatpush.msra.mxu0 %v413
    %v415 = vand.u32 %v134, 4294901760
    %v416 = vsub.f32 %v134, %v415
    %v417 = vand.u32 %v416, 4294901760
    %418 = vmatpush.msra.mxu0 %v417
    %v419 = vand.u32 %v132, 4294901760
    %v420 = vsub.f32 %v132, %v419
    %v421 = vand.u32 %v420, 4294901760
    %422 = vmatpush.msra.mxu0 %v421
    %v423 = vand.u32 %v130, 4294901760
    %v424 = vsub.f32 %v130, %v423
    %v425 = vand.u32 %v424, 4294901760
    %426 = vmatpush.msra.mxu0 %v425
    %v427 = vand.u32 %v128, 4294901760
    %v428 = vsub.f32 %v128, %v427
    %v429 = vand.u32 %v428, 4294901760
    %430 = vmatpush.msra.mxu0 %v429
    %v431 = vand.u32 %v126, 4294901760
    %v432 = vsub.f32 %v126, %v431
    %v433 = vand.u32 %v432, 4294901760
    %434 = vmatpush.msra.mxu0 %v433
    %v435 = vand.u32 %v124, 4294901760
    %v436 = vsub.f32 %v124, %v435
    %v437 = vand.u32 %v436, 4294901760
    %438 = vmatpush.msra.mxu0 %v437
    %v439 = vand.u32 %v122, 4294901760
    %v440 = vsub.f32 %v122, %v439
    %v441 = vand.u32 %v440, 4294901760
    %442 = vmatpush.msra.mxu0 %v441
    %v443 = vand.u32 %v120, 4294901760
    %v444 = vsub.f32 %v120, %v443
    %v445 = vand.u32 %v444, 4294901760
    %446 = vmatpush.msra.mxu0 %v445
    %v447 = vand.u32 %v118, 4294901760
    %v448 = vsub.f32 %v118, %v447
    %v449 = vand.u32 %v448, 4294901760
    %450 = vmatpush.msra.mxu0 %v449
    %v451 = vand.u32 %v116, 4294901760
    %v452 = vsub.f32 %v116, %v451
    %v453 = vand.u32 %v452, 4294901760
    %454 = vmatpush.msra.mxu0 %v453
    %v455 = vand.u32 %v114, 4294901760
    %v456 = vsub.f32 %v114, %v455
    %v457 = vand.u32 %v456, 4294901760
    %458 = vmatpush.msra.mxu0 %v457
    %v459 = vand.u32 %v112, 4294901760
    %v460 = vsub.f32 %v112, %v459
    %v461 = vand.u32 %v460, 4294901760
    %462 = vmatpush.msra.mxu0 %v461
    %v463 = vand.u32 %v110, 4294901760
    %v464 = vsub.f32 %v110, %v463
    %v465 = vand.u32 %v464, 4294901760
    %466 = vmatpush.msra.mxu0 %v465
    %v467 = vand.u32 %v108, 4294901760
    %v468 = vsub.f32 %v108, %v467
    %v469 = vand.u32 %v468, 4294901760
    %470 = vmatpush.msra.mxu0 %v469
    %v471 = vand.u32 %v106, 4294901760
    %472 = vmatmul.f32.gmra.mxu0 %v471
    %v473 = vpop.f32.mrf.mxu0
    %v474 = vadd.f32 %v405, %v473
    %475 = vdwg.mxu0
    %v476 = vand.u32 %v138, 4294901760
    %477 = vmatpush.msra.mxu0 %v476
    %v478 = vand.u32 %v136, 4294901760
    %479 = vmatpush.msra.mxu0 %v478
    %v480 = vand.u32 %v134, 4294901760
    %481 = vmatpush.msra.mxu0 %v480
    %v482 = vand.u32 %v132, 4294901760
    %483 = vmatpush.msra.mxu0 %v482
    %v484 = vand.u32 %v130, 4294901760
    %485 = vmatpush.msra.mxu0 %v484
    %v486 = vand.u32 %v128, 4294901760
    %487 = vmatpush.msra.mxu0 %v486
    %v488 = vand.u32 %v126, 4294901760
    %489 = vmatpush.msra.mxu0 %v488
    %v490 = vand.u32 %v124, 4294901760
    %491 = vmatpush.msra.mxu0 %v490
    %v492 = vand.u32 %v122, 4294901760
    %493 = vmatpush.msra.mxu0 %v492
    %v494 = vand.u32 %v120, 4294901760
    %495 = vmatpush.msra.mxu0 %v494
    %v496 = vand.u32 %v118, 4294901760
    %497 = vmatpush.msra.mxu0 %v496
    %v498 = vand.u32 %v116, 4294901760
    %499 = vmatpush.msra.mxu0 %v498
    %v500 = vand.u32 %v114, 4294901760
    %501 = vmatpush.msra.mxu0 %v500
    %v502 = vand.u32 %v112, 4294901760
    %503 = vmatpush.msra.mxu0 %v502
    %v504 = vand.u32 %v110, 4294901760
    %505 = vmatpush.msra.mxu0 %v504
    %v506 = vand.u32 %v108, 4294901760
    %507 = vmatpush.msra.mxu0 %v506
    %v508 = vand.u32 %v106, 4294901760
    %509 = vmatmul.f32.gmra.mxu0 %v508
    %v510 = vpop.f32.mrf.mxu0
    %v511 = vadd.f32 %v474, %v510
    %512 = vdwg.mxu0
    %v513 = vand.u32 %v170, 4294901760
    %514 = vmatpush.msra.mxu0 %v513
    %v515 = vand.u32 %v168, 4294901760
    %516 = vmatpush.msra.mxu0 %v515
    %v517 = vand.u32 %v166, 4294901760
    %518 = vmatpush.msra.mxu0 %v517
    %v519 = vand.u32 %v164, 4294901760
    %520 = vmatpush.msra.mxu0 %v519
    %v521 = vand.u32 %v162, 4294901760
    %522 = vmatpush.msra.mxu0 %v521
    %v523 = vand.u32 %v160, 4294901760
    %524 = vmatpush.msra.mxu0 %v523
    %v525 = vand.u32 %v158, 4294901760
    %526 = vmatpush.msra.mxu0 %v525
    %v527 = vand.u32 %v156, 4294901760
    %528 = vmatpush.msra.mxu0 %v527
    %v529 = vand.u32 %v154, 4294901760
    %530 = vmatpush.msra.mxu0 %v529
    %v531 = vand.u32 %v152, 4294901760
    %532 = vmatpush.msra.mxu0 %v531
    %v533 = vand.u32 %v150, 4294901760
    %534 = vmatpush.msra.mxu0 %v533
    %v535 = vand.u32 %v148, 4294901760
    %536 = vmatpush.msra.mxu0 %v535
    %v537 = vand.u32 %v146, 4294901760
    %538 = vmatpush.msra.mxu0 %v537
    %v539 = vand.u32 %v144, 4294901760
    %540 = vmatpush.msra.mxu0 %v539
    %v541 = vand.u32 %v142, 4294901760
    %542 = vmatpush.msra.mxu0 %v541
    %v543 = vand.u32 %v140, 4294901760
    %544 = vmatpush.msra.mxu0 %v543
    %v545 = vand.u32 %v107, 4294901760
    %v546 = vsub.f32 %v107, %v545
    %v547 = vand.u32 %v546, 4294901760
    %v548 = vsub.f32 %v546, %v547
    %v549 = vand.u32 %v548, 4294901760
    %550 = vmatmul.f32.gmra.mxu0 %v549
    %v551 = vpop.f32.mrf.mxu0
    %v552 = vadd.f32 %v511, %v551
    %553 = vdwg.mxu0
    %v554 = vand.u32 %v170, 4294901760
    %v555 = vsub.f32 %v170, %v554
    %v556 = vand.u32 %v555, 4294901760
    %v557 = vsub.f32 %v555, %v556
    %v558 = vand.u32 %v557, 4294901760
    %559 = vmatpush.msra.mxu0 %v558
    %v560 = vand.u32 %v168, 4294901760
    %v561 = vsub.f32 %v168, %v560
    %v562 = vand.u32 %v561, 4294901760
    %v563 = vsub.f32 %v561, %v562
    %v564 = vand.u32 %v563, 4294901760
    %565 = vmatpush.msra.mxu0 %v564
    %v566 = vand.u32 %v166, 4294901760
    %v567 = vsub.f32 %v166, %v566
    %v568 = vand.u32 %v567, 4294901760
    %v569 = vsub.f32 %v567, %v568
    %v570 = vand.u32 %v569, 4294901760
    %571 = vmatpush.msra.mxu0 %v570
    %v572 = vand.u32 %v164, 4294901760
    %v573 = vsub.f32 %v164, %v572
    %v574 = vand.u32 %v573, 4294901760
    %v575 = vsub.f32 %v573, %v574
    %v576 = vand.u32 %v575, 4294901760
    %577 = vmatpush.msra.mxu0 %v576
    %v578 = vand.u32 %v162, 4294901760
    %v579 = vsub.f32 %v162, %v578
    %v580 = vand.u32 %v579, 4294901760
    %v581 = vsub.f32 %v579, %v580
    %v582 = vand.u32 %v581, 4294901760
    %583 = vmatpush.msra.mxu0 %v582
    %v584 = vand.u32 %v160, 4294901760
    %v585 = vsub.f32 %v160, %v584
    %v586 = vand.u32 %v585, 4294901760
    %v587 = vsub.f32 %v585, %v586
    %v588 = vand.u32 %v587, 4294901760
    %589 = vmatpush.msra.mxu0 %v588
    %v590 = vand.u32 %v158, 4294901760
    %v591 = vsub.f32 %v158, %v590
    %v592 = vand.u32 %v591, 4294901760
    %v593 = vsub.f32 %v591, %v592
    %v594 = vand.u32 %v593, 4294901760
    %595 = vmatpush.msra.mxu0 %v594
    %v596 = vand.u32 %v156, 4294901760
    %v597 = vsub.f32 %v156, %v596
    %v598 = vand.u32 %v597, 4294901760
    %v599 = vsub.f32 %v597, %v598
    %v600 = vand.u32 %v599, 4294901760
    %601 = vmatpush.msra.mxu0 %v600
    %v602 = vand.u32 %v154, 4294901760
    %v603 = vsub.f32 %v154, %v602
    %v604 = vand.u32 %v603, 4294901760
    %v605 = vsub.f32 %v603, %v604
    %v606 = vand.u32 %v605, 4294901760
    %607 = vmatpush.msra.mxu0 %v606
    %v608 = vand.u32 %v152, 4294901760
    %v609 = vsub.f32 %v152, %v608
    %v610 = vand.u32 %v609, 4294901760
    %v611 = vsub.f32 %v609, %v610
    %v612 = vand.u32 %v611, 4294901760
    %613 = vmatpush.msra.mxu0 %v612
    %v614 = vand.u32 %v150, 4294901760
    %v615 = vsub.f32 %v150, %v614
    %v616 = vand.u32 %v615, 4294901760
    %v617 = vsub.f32 %v615, %v616
    %v618 = vand.u32 %v617, 4294901760
    %619 = vmatpush.msra.mxu0 %v618
    %v620 = vand.u32 %v148, 4294901760
    %v621 = vsub.f32 %v148, %v620
    %v622 = vand.u32 %v621, 4294901760
    %v623 = vsub.f32 %v621, %v622
    %v624 = vand.u32 %v623, 4294901760
    %625 = vmatpush.msra.mxu0 %v624
    %v626 = vand.u32 %v146, 4294901760
    %v627 = vsub.f32 %v146, %v626
    %v628 = vand.u32 %v627, 4294901760
    %v629 = vsub.f32 %v627, %v628
    %v630 = vand.u32 %v629, 4294901760
    %631 = vmatpush.msra.mxu0 %v630
    %v632 = vand.u32 %v144, 4294901760
    %v633 = vsub.f32 %v144, %v632
    %v634 = vand.u32 %v633, 4294901760
    %v635 = vsub.f32 %v633, %v634
    %v636 = vand.u32 %v635, 4294901760
    %637 = vmatpush.msra.mxu0 %v636
    %v638 = vand.u32 %v142, 4294901760
    %v639 = vsub.f32 %v142, %v638
    %v640 = vand.u32 %v639, 4294901760
    %v641 = vsub.f32 %v639, %v640
    %v642 = vand.u32 %v641, 4294901760
    %643 = vmatpush.msra.mxu0 %v642
    %v644 = vand.u32 %v140, 4294901760
    %v645 = vsub.f32 %v140, %v644
    %v646 = vand.u32 %v645, 4294901760
    %v647 = vsub.f32 %v645, %v646
    %v648 = vand.u32 %v647, 4294901760
    %649 = vmatpush.msra.mxu0 %v648
    %v650 = vand.u32 %v107, 4294901760
    %651 = vmatmul.f32.gmra.mxu0 %v650
    %v652 = vpop.f32.mrf.mxu0
    %v653 = vadd.f32 %v552, %v652
    %654 = vdwg.mxu0
    %v655 = vand.u32 %v170, 4294901760
    %v656 = vsub.f32 %v170, %v655
    %657 = vmatpush.msra.mxu0 %v656
    %v658 = vand.u32 %v168, 4294901760
    %v659 = vsub.f32 %v168, %v658
    %660 = vmatpush.msra.mxu0 %v659
    %v661 = vand.u32 %v166, 4294901760
    %v662 = vsub.f32 %v166, %v661
    %663 = vmatpush.msra.mxu0 %v662
    %v664 = vand.u32 %v164, 4294901760
    %v665 = vsub.f32 %v164, %v664
    %666 = vmatpush.msra.mxu0 %v665
    %v667 = vand.u32 %v162, 4294901760
    %v668 = vsub.f32 %v162, %v667
    %669 = vmatpush.msra.mxu0 %v668
    %v670 = vand.u32 %v160, 4294901760
    %v671 = vsub.f32 %v160, %v670
    %672 = vmatpush.msra.mxu0 %v671
    %v673 = vand.u32 %v158, 4294901760
    %v674 = vsub.f32 %v158, %v673
    %675 = vmatpush.msra.mxu0 %v674
    %v676 = vand.u32 %v156, 4294901760
    %v677 = vsub.f32 %v156, %v676
    %678 = vmatpush.msra.mxu0 %v677
    %v679 = vand.u32 %v154, 4294901760
    %v680 = vsub.f32 %v154, %v679
    %681 = vmatpush.msra.mxu0 %v680
    %v682 = vand.u32 %v152, 4294901760
    %v683 = vsub.f32 %v152, %v682
    %684 = vmatpush.msra.mxu0 %v683
    %v685 = vand.u32 %v150, 4294901760
    %v686 = vsub.f32 %v150, %v685
    %687 = vmatpush.msra.mxu0 %v686
    %v688 = vand.u32 %v148, 4294901760
    %v689 = vsub.f32 %v148, %v688
    %690 = vmatpush.msra.mxu0 %v689
    %v691 = vand.u32 %v146, 4294901760
    %v692 = vsub.f32 %v146, %v691
    %693 = vmatpush.msra.mxu0 %v692
    %v694 = vand.u32 %v144, 4294901760
    %v695 = vsub.f32 %v144, %v694
    %696 = vmatpush.msra.mxu0 %v695
    %v697 = vand.u32 %v142, 4294901760
    %v698 = vsub.f32 %v142, %v697
    %699 = vmatpush.msra.mxu0 %v698
    %v700 = vand.u32 %v140, 4294901760
    %v701 = vsub.f32 %v140, %v700
    %702 = vmatpush.msra.mxu0 %v701
    %v703 = vand.u32 %v107, 4294901760
    %v704 = vsub.f32 %v107, %v703
    %705 = vmatmul.f32.gmra.mxu0 %v704
    %v706 = vpop.f32.mrf.mxu0
    %v707 = vadd.f32 %v653, %v706
    %708 = vdwg.mxu0
    %v709 = vand.u32 %v170, 4294901760
    %710 = vmatpush.msra.mxu0 %v709
    %v711 = vand.u32 %v168, 4294901760
    %712 = vmatpush.msra.mxu0 %v711
    %v713 = vand.u32 %v166, 4294901760
    %714 = vmatpush.msra.mxu0 %v713
    %v715 = vand.u32 %v164, 4294901760
    %716 = vmatpush.msra.mxu0 %v715
    %v717 = vand.u32 %v162, 4294901760
    %718 = vmatpush.msra.mxu0 %v717
    %v719 = vand.u32 %v160, 4294901760
    %720 = vmatpush.msra.mxu0 %v719
    %v721 = vand.u32 %v158, 4294901760
    %722 = vmatpush.msra.mxu0 %v721
    %v723 = vand.u32 %v156, 4294901760
    %724 = vmatpush.msra.mxu0 %v723
    %v725 = vand.u32 %v154, 4294901760
    %726 = vmatpush.msra.mxu0 %v725
    %v727 = vand.u32 %v152, 4294901760
    %728 = vmatpush.msra.mxu0 %v727
    %v729 = vand.u32 %v150, 4294901760
    %730 = vmatpush.msra.mxu0 %v729
    %v731 = vand.u32 %v148, 4294901760
    %732 = vmatpush.msra.mxu0 %v731
    %v733 = vand.u32 %v146, 4294901760
    %734 = vmatpush.msra.mxu0 %v733
    %v735 = vand.u32 %v144, 4294901760
    %736 = vmatpush.msra.mxu0 %v735
    %v737 = vand.u32 %v142, 4294901760
    %738 = vmatpush.msra.mxu0 %v737
    %v739 = vand.u32 %v140, 4294901760
    %740 = vmatpush.msra.mxu0 %v739
    %v741 = vand.u32 %v107, 4294901760
    %v742 = vsub.f32 %v107, %v741
    %v743 = vand.u32 %v742, 4294901760
    %744 = vmatmul.f32.gmra.mxu0 %v743
    %v745 = vpop.f32.mrf.mxu0
    %v746 = vadd.f32 %v707, %v745
    %747 = vdwg.mxu0
    %v748 = vand.u32 %v170, 4294901760
    %v749 = vsub.f32 %v170, %v748
    %v750 = vand.u32 %v749, 4294901760
    %751 = vmatpush.msra.mxu0 %v750
    %v752 = vand.u32 %v168, 4294901760
    %v753 = vsub.f32 %v168, %v752
    %v754 = vand.u32 %v753, 4294901760
    %755 = vmatpush.msra.mxu0 %v754
    %v756 = vand.u32 %v166, 4294901760
    %v757 = vsub.f32 %v166, %v756
    %v758 = vand.u32 %v757, 4294901760
    %759 = vmatpush.msra.mxu0 %v758
    %v760 = vand.u32 %v164, 4294901760
    %v761 = vsub.f32 %v164, %v760
    %v762 = vand.u32 %v761, 4294901760
    %763 = vmatpush.msra.mxu0 %v762
    %v764 = vand.u32 %v162, 4294901760
    %v765 = vsub.f32 %v162, %v764
    %v766 = vand.u32 %v765, 4294901760
    %767 = vmatpush.msra.mxu0 %v766
    %v768 = vand.u32 %v160, 4294901760
    %v769 = vsub.f32 %v160, %v768
    %v770 = vand.u32 %v769, 4294901760
    %771 = vmatpush.msra.mxu0 %v770
    %v772 = vand.u32 %v158, 4294901760
    %v773 = vsub.f32 %v158, %v772
    %v774 = vand.u32 %v773, 4294901760
    %775 = vmatpush.msra.mxu0 %v774
    %v776 = vand.u32 %v156, 4294901760
    %v777 = vsub.f32 %v156, %v776
    %v778 = vand.u32 %v777, 4294901760
    %779 = vmatpush.msra.mxu0 %v778
    %v780 = vand.u32 %v154, 4294901760
    %v781 = vsub.f32 %v154, %v780
    %v782 = vand.u32 %v781, 4294901760
    %783 = vmatpush.msra.mxu0 %v782
    %v784 = vand.u32 %v152, 4294901760
    %v785 = vsub.f32 %v152, %v784
    %v786 = vand.u32 %v785, 4294901760
    %787 = vmatpush.msra.mxu0 %v786
    %v788 = vand.u32 %v150, 4294901760
    %v789 = vsub.f32 %v150, %v788
    %v790 = vand.u32 %v789, 4294901760
    %791 = vmatpush.msra.mxu0 %v790
    %v792 = vand.u32 %v148, 4294901760
    %v793 = vsub.f32 %v148, %v792
    %v794 = vand.u32 %v793, 4294901760
    %795 = vmatpush.msra.mxu0 %v794
    %v796 = vand.u32 %v146, 4294901760
    %v797 = vsub.f32 %v146, %v796
    %v798 = vand.u32 %v797, 4294901760
    %799 = vmatpush.msra.mxu0 %v798
    %v800 = vand.u32 %v144, 4294901760
    %v801 = vsub.f32 %v144, %v800
    %v802 = vand.u32 %v801, 4294901760
    %803 = vmatpush.msra.mxu0 %v802
    %v804 = vand.u32 %v142, 4294901760
    %v805 = vsub.f32 %v142, %v804
    %v806 = vand.u32 %v805, 4294901760
    %807 = vmatpush.msra.mxu0 %v806
    %v808 = vand.u32 %v140, 4294901760
    %v809 = vsub.f32 %v140, %v808
    %v810 = vand.u32 %v809, 4294901760
    %811 = vmatpush.msra.mxu0 %v810
    %v812 = vand.u32 %v107, 4294901760
    %813 = vmatmul.f32.gmra.mxu0 %v812
    %v814 = vpop.f32.mrf.mxu0
    %v815 = vadd.f32 %v746, %v814
    %816 = vdwg.mxu0
    %v817 = vand.u32 %v170, 4294901760
    %818 = vmatpush.msra.mxu0 %v817
    %v819 = vand.u32 %v168, 4294901760
    %820 = vmatpush.msra.mxu0 %v819
    %v821 = vand.u32 %v166, 4294901760
    %822 = vmatpush.msra.mxu0 %v821
    %v823 = vand.u32 %v164, 4294901760
    %824 = vmatpush.msra.mxu0 %v823
    %v825 = vand.u32 %v162, 4294901760
    %826 = vmatpush.msra.mxu0 %v825
    %v827 = vand.u32 %v160, 4294901760
    %828 = vmatpush.msra.mxu0 %v827
    %v829 = vand.u32 %v158, 4294901760
    %830 = vmatpush.msra.mxu0 %v829
    %v831 = vand.u32 %v156, 4294901760
    %832 = vmatpush.msra.mxu0 %v831
    %v833 = vand.u32 %v154, 4294901760
    %834 = vmatpush.msra.mxu0 %v833
    %v835 = vand.u32 %v152, 4294901760
    %836 = vmatpush.msra.mxu0 %v835
    %v837 = vand.u32 %v150, 4294901760
    %838 = vmatpush.msra.mxu0 %v837
    %v839 = vand.u32 %v148, 4294901760
    %840 = vmatpush.msra.mxu0 %v839
    %v841 = vand.u32 %v146, 4294901760
    %842 = vmatpush.msra.mxu0 %v841
    %v843 = vand.u32 %v144, 4294901760
    %844 = vmatpush.msra.mxu0 %v843
    %v845 = vand.u32 %v142, 4294901760
    %846 = vmatpush.msra.mxu0 %v845
    %v847 = vand.u32 %v140, 4294901760
    %848 = vmatpush.msra.mxu0 %v847
    %v849 = vand.u32 %v107, 4294901760
    %850 = vmatmul.f32.gmra.mxu0 %v849
    %v851 = vpop.f32.mrf.mxu0
    %v852 = vadd.f32 %v815, %v851
    %853 = vdwg.mxu0
    %v854 = vand.u32 %v139, 4294901760
    %855 = vmatpush.msra.mxu0 %v854
    %v856 = vand.u32 %v137, 4294901760
    %857 = vmatpush.msra.mxu0 %v856
    %v858 = vand.u32 %v135, 4294901760
    %859 = vmatpush.msra.mxu0 %v858
    %v860 = vand.u32 %v133, 4294901760
    %861 = vmatpush.msra.mxu0 %v860
    %v862 = vand.u32 %v131, 4294901760
    %863 = vmatpush.msra.mxu0 %v862
    %v864 = vand.u32 %v129, 4294901760
    %865 = vmatpush.msra.mxu0 %v864
    %v866 = vand.u32 %v127, 4294901760
    %867 = vmatpush.msra.mxu0 %v866
    %v868 = vand.u32 %v125, 4294901760
    %869 = vmatpush.msra.mxu0 %v868
    %v870 = vand.u32 %v123, 4294901760
    %871 = vmatpush.msra.mxu0 %v870
    %v872 = vand.u32 %v121, 4294901760
    %873 = vmatpush.msra.mxu0 %v872
    %v874 = vand.u32 %v119, 4294901760
    %875 = vmatpush.msra.mxu0 %v874
    %v876 = vand.u32 %v117, 4294901760
    %877 = vmatpush.msra.mxu0 %v876
    %v878 = vand.u32 %v115, 4294901760
    %879 = vmatpush.msra.mxu0 %v878
    %v880 = vand.u32 %v113, 4294901760
    %881 = vmatpush.msra.mxu0 %v880
    %v882 = vand.u32 %v111, 4294901760
    %883 = vmatpush.msra.mxu0 %v882
    %v884 = vand.u32 %v109, 4294901760
    %885 = vmatpush.msra.mxu0 %v884
    %v886 = vand.u32 %v106, 4294901760
    %v887 = vsub.f32 %v106, %v886
    %v888 = vand.u32 %v887, 4294901760
    %v889 = vsub.f32 %v887, %v888
    %v890 = vand.u32 %v889, 4294901760
    %891 = vmatmul.f32.gmra.mxu0 %v890
    %v892 = vpop.f32.mrf.mxu0
    %v893 = vadd.f32 0.0, %v892
    %894 = vdwg.mxu0
    %v895 = vand.u32 %v139, 4294901760
    %v896 = vsub.f32 %v139, %v895
    %v897 = vand.u32 %v896, 4294901760
    %v898 = vsub.f32 %v896, %v897
    %v899 = vand.u32 %v898, 4294901760
    %900 = vmatpush.msra.mxu0 %v899
    %v901 = vand.u32 %v137, 4294901760
    %v902 = vsub.f32 %v137, %v901
    %v903 = vand.u32 %v902, 4294901760
    %v904 = vsub.f32 %v902, %v903
    %v905 = vand.u32 %v904, 4294901760
    %906 = vmatpush.msra.mxu0 %v905
    %v907 = vand.u32 %v135, 4294901760
    %v908 = vsub.f32 %v135, %v907
    %v909 = vand.u32 %v908, 4294901760
    %v910 = vsub.f32 %v908, %v909
    %v911 = vand.u32 %v910, 4294901760
    %912 = vmatpush.msra.mxu0 %v911
    %v913 = vand.u32 %v133, 4294901760
    %v914 = vsub.f32 %v133, %v913
    %v915 = vand.u32 %v914, 4294901760
    %v916 = vsub.f32 %v914, %v915
    %v917 = vand.u32 %v916, 4294901760
    %918 = vmatpush.msra.mxu0 %v917
    %v919 = vand.u32 %v131, 4294901760
    %v920 = vsub.f32 %v131, %v919
    %v921 = vand.u32 %v920, 4294901760
    %v922 = vsub.f32 %v920, %v921
    %v923 = vand.u32 %v922, 4294901760
    %924 = vmatpush.msra.mxu0 %v923
    %v925 = vand.u32 %v129, 4294901760
    %v926 = vsub.f32 %v129, %v925
    %v927 = vand.u32 %v926, 4294901760
    %v928 = vsub.f32 %v926, %v927
    %v929 = vand.u32 %v928, 4294901760
    %930 = vmatpush.msra.mxu0 %v929
    %v931 = vand.u32 %v127, 4294901760
    %v932 = vsub.f32 %v127, %v931
    %v933 = vand.u32 %v932, 4294901760
    %v934 = vsub.f32 %v932, %v933
    %v935 = vand.u32 %v934, 4294901760
    %936 = vmatpush.msra.mxu0 %v935
    %v937 = vand.u32 %v125, 4294901760
    %v938 = vsub.f32 %v125, %v937
    %v939 = vand.u32 %v938, 4294901760
    %v940 = vsub.f32 %v938, %v939
    %v941 = vand.u32 %v940, 4294901760
    %942 = vmatpush.msra.mxu0 %v941
    %v943 = vand.u32 %v123, 4294901760
    %v944 = vsub.f32 %v123, %v943
    %v945 = vand.u32 %v944, 4294901760
    %v946 = vsub.f32 %v944, %v945
    %v947 = vand.u32 %v946, 4294901760
    %948 = vmatpush.msra.mxu0 %v947
    %v949 = vand.u32 %v121, 4294901760
    %v950 = vsub.f32 %v121, %v949
    %v951 = vand.u32 %v950, 4294901760
    %v952 = vsub.f32 %v950, %v951
    %v953 = vand.u32 %v952, 4294901760
    %954 = vmatpush.msra.mxu0 %v953
    %v955 = vand.u32 %v119, 4294901760
    %v956 = vsub.f32 %v119, %v955
    %v957 = vand.u32 %v956, 4294901760
    %v958 = vsub.f32 %v956, %v957
    %v959 = vand.u32 %v958, 4294901760
    %960 = vmatpush.msra.mxu0 %v959
    %v961 = vand.u32 %v117, 4294901760
    %v962 = vsub.f32 %v117, %v961
    %v963 = vand.u32 %v962, 4294901760
    %v964 = vsub.f32 %v962, %v963
    %v965 = vand.u32 %v964, 4294901760
    %966 = vmatpush.msra.mxu0 %v965
    %v967 = vand.u32 %v115, 4294901760
    %v968 = vsub.f32 %v115, %v967
    %v969 = vand.u32 %v968, 4294901760
    %v970 = vsub.f32 %v968, %v969
    %v971 = vand.u32 %v970, 4294901760
    %972 = vmatpush.msra.mxu0 %v971
    %v973 = vand.u32 %v113, 4294901760
    %v974 = vsub.f32 %v113, %v973
    %v975 = vand.u32 %v974, 4294901760
    %v976 = vsub.f32 %v974, %v975
    %v977 = vand.u32 %v976, 4294901760
    %978 = vmatpush.msra.mxu0 %v977
    %v979 = vand.u32 %v111, 4294901760
    %v980 = vsub.f32 %v111, %v979
    %v981 = vand.u32 %v980, 4294901760
    %v982 = vsub.f32 %v980, %v981
    %v983 = vand.u32 %v982, 4294901760
    %984 = vmatpush.msra.mxu0 %v983
    %v985 = vand.u32 %v109, 4294901760
    %v986 = vsub.f32 %v109, %v985
    %v987 = vand.u32 %v986, 4294901760
    %v988 = vsub.f32 %v986, %v987
    %v989 = vand.u32 %v988, 4294901760
    %990 = vmatpush.msra.mxu0 %v989
    %v991 = vand.u32 %v106, 4294901760
    %992 = vmatmul.f32.gmra.mxu0 %v991
    %v993 = vpop.f32.mrf.mxu0
    %v994 = vadd.f32 %v893, %v993
    %995 = vdwg.mxu0
    %v996 = vand.u32 %v139, 4294901760
    %v997 = vsub.f32 %v139, %v996
    %998 = vmatpush.msra.mxu0 %v997
    %v999 = vand.u32 %v137, 4294901760
    %v1000 = vsub.f32 %v137, %v999
    %1001 = vmatpush.msra.mxu0 %v1000
    %v1002 = vand.u32 %v135, 4294901760
    %v1003 = vsub.f32 %v135, %v1002
    %1004 = vmatpush.msra.mxu0 %v1003
    %v1005 = vand.u32 %v133, 4294901760
    %v1006 = vsub.f32 %v133, %v1005
    %1007 = vmatpush.msra.mxu0 %v1006
    %v1008 = vand.u32 %v131, 4294901760
    %v1009 = vsub.f32 %v131, %v1008
    %1010 = vmatpush.msra.mxu0 %v1009
    %v1011 = vand.u32 %v129, 4294901760
    %v1012 = vsub.f32 %v129, %v1011
    %1013 = vmatpush.msra.mxu0 %v1012
    %v1014 = vand.u32 %v127, 4294901760
    %v1015 = vsub.f32 %v127, %v1014
    %1016 = vmatpush.msra.mxu0 %v1015
    %v1017 = vand.u32 %v125, 4294901760
    %v1018 = vsub.f32 %v125, %v1017
    %1019 = vmatpush.msra.mxu0 %v1018
    %v1020 = vand.u32 %v123, 4294901760
    %v1021 = vsub.f32 %v123, %v1020
    %1022 = vmatpush.msra.mxu0 %v1021
    %v1023 = vand.u32 %v121, 4294901760
    %v1024 = vsub.f32 %v121, %v1023
    %1025 = vmatpush.msra.mxu0 %v1024
    %v1026 = vand.u32 %v119, 4294901760
    %v1027 = vsub.f32 %v119, %v1026
    %1028 = vmatpush.msra.mxu0 %v1027
    %v1029 = vand.u32 %v117, 4294901760
    %v1030 = vsub.f32 %v117, %v1029
    %1031 = vmatpush.msra.mxu0 %v1030
    %v1032 = vand.u32 %v115, 4294901760
    %v1033 = vsub.f32 %v115, %v1032
    %1034 = vmatpush.msra.mxu0 %v1033
    %v1035 = vand.u32 %v113, 4294901760
    %v1036 = vsub.f32 %v113, %v1035
    %1037 = vmatpush.msra.mxu0 %v1036
    %v1038 = vand.u32 %v111, 4294901760
    %v1039 = vsub.f32 %v111, %v1038
    %1040 = vmatpush.msra.mxu0 %v1039
    %v1041 = vand.u32 %v109, 4294901760
    %v1042 = vsub.f32 %v109, %v1041
    %1043 = vmatpush.msra.mxu0 %v1042
    %v1044 = vand.u32 %v106, 4294901760
    %v1045 = vsub.f32 %v106, %v1044
    %1046 = vmatmul.f32.gmra.mxu0 %v1045
    %v1047 = vpop.f32.mrf.mxu0
    %v1048 = vadd.f32 %v994, %v1047
    %1049 = vdwg.mxu0
    %v1050 = vand.u32 %v139, 4294901760
    %1051 = vmatpush.msra.mxu0 %v1050
    %v1052 = vand.u32 %v137, 4294901760
    %1053 = vmatpush.msra.mxu0 %v1052
    %v1054 = vand.u32 %v135, 4294901760
    %1055 = vmatpush.msra.mxu0 %v1054
    %v1056 = vand.u32 %v133, 4294901760
    %1057 = vmatpush.msra.mxu0 %v1056
    %v1058 = vand.u32 %v131, 4294901760
    %1059 = vmatpush.msra.mxu0 %v1058
    %v1060 = vand.u32 %v129, 4294901760
    %1061 = vmatpush.msra.mxu0 %v1060
    %v1062 = vand.u32 %v127, 4294901760
    %1063 = vmatpush.msra.mxu0 %v1062
    %v1064 = vand.u32 %v125, 4294901760
    %1065 = vmatpush.msra.mxu0 %v1064
    %v1066 = vand.u32 %v123, 4294901760
    %1067 = vmatpush.msra.mxu0 %v1066
    %v1068 = vand.u32 %v121, 4294901760
    %1069 = vmatpush.msra.mxu0 %v1068
    %v1070 = vand.u32 %v119, 4294901760
    %1071 = vmatpush.msra.mxu0 %v1070
    %v1072 = vand.u32 %v117, 4294901760
    %1073 = vmatpush.msra.mxu0 %v1072
    %v1074 = vand.u32 %v115, 4294901760
    %1075 = vmatpush.msra.mxu0 %v1074
    %v1076 = vand.u32 %v113, 4294901760
    %1077 = vmatpush.msra.mxu0 %v1076
    %v1078 = vand.u32 %v111, 4294901760
    %1079 = vmatpush.msra.mxu0 %v1078
    %v1080 = vand.u32 %v109, 4294901760
    %1081 = vmatpush.msra.mxu0 %v1080
    %v1082 = vand.u32 %v106, 4294901760
    %v1083 = vsub.f32 %v106, %v1082
    %v1084 = vand.u32 %v1083, 4294901760
    %1085 = vmatmul.f32.gmra.mxu0 %v1084
    %v1086 = vpop.f32.mrf.mxu0
    %v1087 = vadd.f32 %v1048, %v1086
    %1088 = vdwg.mxu0
    %v1089 = vand.u32 %v139, 4294901760
    %v1090 = vsub.f32 %v139, %v1089
    %v1091 = vand.u32 %v1090, 4294901760
    %1092 = vmatpush.msra.mxu0 %v1091
    %v1093 = vand.u32 %v137, 4294901760
    %v1094 = vsub.f32 %v137, %v1093
    %v1095 = vand.u32 %v1094, 4294901760
    %1096 = vmatpush.msra.mxu0 %v1095
    %v1097 = vand.u32 %v135, 4294901760
    %v1098 = vsub.f32 %v135, %v1097
    %v1099 = vand.u32 %v1098, 4294901760
    %1100 = vmatpush.msra.mxu0 %v1099
    %v1101 = vand.u32 %v133, 4294901760
    %v1102 = vsub.f32 %v133, %v1101
    %v1103 = vand.u32 %v1102, 4294901760
    %1104 = vmatpush.msra.mxu0 %v1103
    %v1105 = vand.u32 %v131, 4294901760
    %v1106 = vsub.f32 %v131, %v1105
    %v1107 = vand.u32 %v1106, 4294901760
    %1108 = vmatpush.msra.mxu0 %v1107
    %v1109 = vand.u32 %v129, 4294901760
    %v1110 = vsub.f32 %v129, %v1109
    %v1111 = vand.u32 %v1110, 4294901760
    %1112 = vmatpush.msra.mxu0 %v1111
    %v1113 = vand.u32 %v127, 4294901760
    %v1114 = vsub.f32 %v127, %v1113
    %v1115 = vand.u32 %v1114, 4294901760
    %1116 = vmatpush.msra.mxu0 %v1115
    %v1117 = vand.u32 %v125, 4294901760
    %v1118 = vsub.f32 %v125, %v1117
    %v1119 = vand.u32 %v1118, 4294901760
    %1120 = vmatpush.msra.mxu0 %v1119
    %v1121 = vand.u32 %v123, 4294901760
    %v1122 = vsub.f32 %v123, %v1121
    %v1123 = vand.u32 %v1122, 4294901760
    %1124 = vmatpush.msra.mxu0 %v1123
    %v1125 = vand.u32 %v121, 4294901760
    %v1126 = vsub.f32 %v121, %v1125
    %v1127 = vand.u32 %v1126, 4294901760
    %1128 = vmatpush.msra.mxu0 %v1127
    %v1129 = vand.u32 %v119, 4294901760
    %v1130 = vsub.f32 %v119, %v1129
    %v1131 = vand.u32 %v1130, 4294901760
    %1132 = vmatpush.msra.mxu0 %v1131
    %v1133 = vand.u32 %v117, 4294901760
    %v1134 = vsub.f32 %v117, %v1133
    %v1135 = vand.u32 %v1134, 4294901760
    %1136 = vmatpush.msra.mxu0 %v1135
    %v1137 = vand.u32 %v115, 4294901760
    %v1138 = vsub.f32 %v115, %v1137
    %v1139 = vand.u32 %v1138, 4294901760
    %1140 = vmatpush.msra.mxu0 %v1139
    %v1141 = vand.u32 %v113, 4294901760
    %v1142 = vsub.f32 %v113, %v1141
    %v1143 = vand.u32 %v1142, 4294901760
    %1144 = vmatpush.msra.mxu0 %v1143
    %v1145 = vand.u32 %v111, 4294901760
    %v1146 = vsub.f32 %v111, %v1145
    %v1147 = vand.u32 %v1146, 4294901760
    %1148 = vmatpush.msra.mxu0 %v1147
    %v1149 = vand.u32 %v109, 4294901760
    %v1150 = vsub.f32 %v109, %v1149
    %v1151 = vand.u32 %v1150, 4294901760
    %1152 = vmatpush.msra.mxu0 %v1151
    %v1153 = vand.u32 %v106, 4294901760
    %1154 = vmatmul.f32.gmra.mxu0 %v1153
    %v1155 = vpop.f32.mrf.mxu0
    %v1156 = vadd.f32 %v1087, %v1155
    %1157 = vdwg.mxu0
    %v1158 = vand.u32 %v139, 4294901760
    %1159 = vmatpush.msra.mxu0 %v1158
    %v1160 = vand.u32 %v137, 4294901760
    %1161 = vmatpush.msra.mxu0 %v1160
    %v1162 = vand.u32 %v135, 4294901760
    %1163 = vmatpush.msra.mxu0 %v1162
    %v1164 = vand.u32 %v133, 4294901760
    %1165 = vmatpush.msra.mxu0 %v1164
    %v1166 = vand.u32 %v131, 4294901760
    %1167 = vmatpush.msra.mxu0 %v1166
    %v1168 = vand.u32 %v129, 4294901760
    %1169 = vmatpush.msra.mxu0 %v1168
    %v1170 = vand.u32 %v127, 4294901760
    %1171 = vmatpush.msra.mxu0 %v1170
    %v1172 = vand.u32 %v125, 4294901760
    %1173 = vmatpush.msra.mxu0 %v1172
    %v1174 = vand.u32 %v123, 4294901760
    %1175 = vmatpush.msra.mxu0 %v1174
    %v1176 = vand.u32 %v121, 4294901760
    %1177 = vmatpush.msra.mxu0 %v1176
    %v1178 = vand.u32 %v119, 4294901760
    %1179 = vmatpush.msra.mxu0 %v1178
    %v1180 = vand.u32 %v117, 4294901760
    %1181 = vmatpush.msra.mxu0 %v1180
    %v1182 = vand.u32 %v115, 4294901760
    %1183 = vmatpush.msra.mxu0 %v1182
    %v1184 = vand.u32 %v113, 4294901760
    %1185 = vmatpush.msra.mxu0 %v1184
    %v1186 = vand.u32 %v111, 4294901760
    %1187 = vmatpush.msra.mxu0 %v1186
    %v1188 = vand.u32 %v109, 4294901760
    %1189 = vmatpush.msra.mxu0 %v1188
    %v1190 = vand.u32 %v106, 4294901760
    %1191 = vmatmul.f32.gmra.mxu0 %v1190
    %v1192 = vpop.f32.mrf.mxu0
    %v1193 = vadd.f32 %v1156, %v1192
    %1194 = vdwg.mxu0
    %v1195 = vand.u32 %v171, 4294901760
    %1196 = vmatpush.msra.mxu0 %v1195
    %v1197 = vand.u32 %v169, 4294901760
    %1198 = vmatpush.msra.mxu0 %v1197
    %v1199 = vand.u32 %v167, 4294901760
    %1200 = vmatpush.msra.mxu0 %v1199
    %v1201 = vand.u32 %v165, 4294901760
    %1202 = vmatpush.msra.mxu0 %v1201
    %v1203 = vand.u32 %v163, 4294901760
    %1204 = vmatpush.msra.mxu0 %v1203
    %v1205 = vand.u32 %v161, 4294901760
    %1206 = vmatpush.msra.mxu0 %v1205
    %v1207 = vand.u32 %v159, 4294901760
    %1208 = vmatpush.msra.mxu0 %v1207
    %v1209 = vand.u32 %v157, 4294901760
    %1210 = vmatpush.msra.mxu0 %v1209
    %v1211 = vand.u32 %v155, 4294901760
    %1212 = vmatpush.msra.mxu0 %v1211
    %v1213 = vand.u32 %v153, 4294901760
    %1214 = vmatpush.msra.mxu0 %v1213
    %v1215 = vand.u32 %v151, 4294901760
    %1216 = vmatpush.msra.mxu0 %v1215
    %v1217 = vand.u32 %v149, 4294901760
    %1218 = vmatpush.msra.mxu0 %v1217
    %v1219 = vand.u32 %v147, 4294901760
    %1220 = vmatpush.msra.mxu0 %v1219
    %v1221 = vand.u32 %v145, 4294901760
    %1222 = vmatpush.msra.mxu0 %v1221
    %v1223 = vand.u32 %v143, 4294901760
    %1224 = vmatpush.msra.mxu0 %v1223
    %v1225 = vand.u32 %v141, 4294901760
    %1226 = vmatpush.msra.mxu0 %v1225
    %v1227 = vand.u32 %v107, 4294901760
    %v1228 = vsub.f32 %v107, %v1227
    %v1229 = vand.u32 %v1228, 4294901760
    %v1230 = vsub.f32 %v1228, %v1229
    %v1231 = vand.u32 %v1230, 4294901760
    %1232 = vmatmul.f32.gmra.mxu0 %v1231
    %v1233 = vpop.f32.mrf.mxu0
    %v1234 = vadd.f32 %v1193, %v1233
    %1235 = vdwg.mxu0
    %v1236 = vand.u32 %v171, 4294901760
    %v1237 = vsub.f32 %v171, %v1236
    %v1238 = vand.u32 %v1237, 4294901760
    %v1239 = vsub.f32 %v1237, %v1238
    %v1240 = vand.u32 %v1239, 4294901760
    %1241 = vmatpush.msra.mxu0 %v1240
    %v1242 = vand.u32 %v169, 4294901760
    %v1243 = vsub.f32 %v169, %v1242
    %v1244 = vand.u32 %v1243, 4294901760
    %v1245 = vsub.f32 %v1243, %v1244
    %v1246 = vand.u32 %v1245, 4294901760
    %1247 = vmatpush.msra.mxu0 %v1246
    %v1248 = vand.u32 %v167, 4294901760
    %v1249 = vsub.f32 %v167, %v1248
    %v1250 = vand.u32 %v1249, 4294901760
    %v1251 = vsub.f32 %v1249, %v1250
    %v1252 = vand.u32 %v1251, 4294901760
    %1253 = vmatpush.msra.mxu0 %v1252
    %v1254 = vand.u32 %v165, 4294901760
    %v1255 = vsub.f32 %v165, %v1254
    %v1256 = vand.u32 %v1255, 4294901760
    %v1257 = vsub.f32 %v1255, %v1256
    %v1258 = vand.u32 %v1257, 4294901760
    %1259 = vmatpush.msra.mxu0 %v1258
    %v1260 = vand.u32 %v163, 4294901760
    %v1261 = vsub.f32 %v163, %v1260
    %v1262 = vand.u32 %v1261, 4294901760
    %v1263 = vsub.f32 %v1261, %v1262
    %v1264 = vand.u32 %v1263, 4294901760
    %1265 = vmatpush.msra.mxu0 %v1264
    %v1266 = vand.u32 %v161, 4294901760
    %v1267 = vsub.f32 %v161, %v1266
    %v1268 = vand.u32 %v1267, 4294901760
    %v1269 = vsub.f32 %v1267, %v1268
    %v1270 = vand.u32 %v1269, 4294901760
    %1271 = vmatpush.msra.mxu0 %v1270
    %v1272 = vand.u32 %v159, 4294901760
    %v1273 = vsub.f32 %v159, %v1272
    %v1274 = vand.u32 %v1273, 4294901760
    %v1275 = vsub.f32 %v1273, %v1274
    %v1276 = vand.u32 %v1275, 4294901760
    %1277 = vmatpush.msra.mxu0 %v1276
    %v1278 = vand.u32 %v157, 4294901760
    %v1279 = vsub.f32 %v157, %v1278
    %v1280 = vand.u32 %v1279, 4294901760
    %v1281 = vsub.f32 %v1279, %v1280
    %v1282 = vand.u32 %v1281, 4294901760
    %1283 = vmatpush.msra.mxu0 %v1282
    %v1284 = vand.u32 %v155, 4294901760
    %v1285 = vsub.f32 %v155, %v1284
    %v1286 = vand.u32 %v1285, 4294901760
    %v1287 = vsub.f32 %v1285, %v1286
    %v1288 = vand.u32 %v1287, 4294901760
    %1289 = vmatpush.msra.mxu0 %v1288
    %v1290 = vand.u32 %v153, 4294901760
    %v1291 = vsub.f32 %v153, %v1290
    %v1292 = vand.u32 %v1291, 4294901760
    %v1293 = vsub.f32 %v1291, %v1292
    %v1294 = vand.u32 %v1293, 4294901760
    %1295 = vmatpush.msra.mxu0 %v1294
    %v1296 = vand.u32 %v151, 4294901760
    %v1297 = vsub.f32 %v151, %v1296
    %v1298 = vand.u32 %v1297, 4294901760
    %v1299 = vsub.f32 %v1297, %v1298
    %v1300 = vand.u32 %v1299, 4294901760
    %1301 = vmatpush.msra.mxu0 %v1300
    %v1302 = vand.u32 %v149, 4294901760
    %v1303 = vsub.f32 %v149, %v1302
    %v1304 = vand.u32 %v1303, 4294901760
    %v1305 = vsub.f32 %v1303, %v1304
    %v1306 = vand.u32 %v1305, 4294901760
    %1307 = vmatpush.msra.mxu0 %v1306
    %v1308 = vand.u32 %v147, 4294901760
    %v1309 = vsub.f32 %v147, %v1308
    %v1310 = vand.u32 %v1309, 4294901760
    %v1311 = vsub.f32 %v1309, %v1310
    %v1312 = vand.u32 %v1311, 4294901760
    %1313 = vmatpush.msra.mxu0 %v1312
    %v1314 = vand.u32 %v145, 4294901760
    %v1315 = vsub.f32 %v145, %v1314
    %v1316 = vand.u32 %v1315, 4294901760
    %v1317 = vsub.f32 %v1315, %v1316
    %v1318 = vand.u32 %v1317, 4294901760
    %1319 = vmatpush.msra.mxu0 %v1318
    %v1320 = vand.u32 %v143, 4294901760
    %v1321 = vsub.f32 %v143, %v1320
    %v1322 = vand.u32 %v1321, 4294901760
    %v1323 = vsub.f32 %v1321, %v1322
    %v1324 = vand.u32 %v1323, 4294901760
    %1325 = vmatpush.msra.mxu0 %v1324
    %v1326 = vand.u32 %v141, 4294901760
    %v1327 = vsub.f32 %v141, %v1326
    %v1328 = vand.u32 %v1327, 4294901760
    %v1329 = vsub.f32 %v1327, %v1328
    %v1330 = vand.u32 %v1329, 4294901760
    %1331 = vmatpush.msra.mxu0 %v1330
    %v1332 = vand.u32 %v107, 4294901760
    %1333 = vmatmul.f32.gmra.mxu0 %v1332
    %v1334 = vpop.f32.mrf.mxu0
    %v1335 = vadd.f32 %v1234, %v1334
    %1336 = vdwg.mxu0
    %v1337 = vand.u32 %v171, 4294901760
    %v1338 = vsub.f32 %v171, %v1337
    %1339 = vmatpush.msra.mxu0 %v1338
    %v1340 = vand.u32 %v169, 4294901760
    %v1341 = vsub.f32 %v169, %v1340
    %1342 = vmatpush.msra.mxu0 %v1341
    %v1343 = vand.u32 %v167, 4294901760
    %v1344 = vsub.f32 %v167, %v1343
    %1345 = vmatpush.msra.mxu0 %v1344
    %v1346 = vand.u32 %v165, 4294901760
    %v1347 = vsub.f32 %v165, %v1346
    %1348 = vmatpush.msra.mxu0 %v1347
    %v1349 = vand.u32 %v163, 4294901760
    %v1350 = vsub.f32 %v163, %v1349
    %1351 = vmatpush.msra.mxu0 %v1350
    %v1352 = vand.u32 %v161, 4294901760
    %v1353 = vsub.f32 %v161, %v1352
    %1354 = vmatpush.msra.mxu0 %v1353
    %v1355 = vand.u32 %v159, 4294901760
    %v1356 = vsub.f32 %v159, %v1355
    %1357 = vmatpush.msra.mxu0 %v1356
    %v1358 = vand.u32 %v157, 4294901760
    %v1359 = vsub.f32 %v157, %v1358
    %1360 = vmatpush.msra.mxu0 %v1359
    %v1361 = vand.u32 %v155, 4294901760
    %v1362 = vsub.f32 %v155, %v1361
    %1363 = vmatpush.msra.mxu0 %v1362
    %v1364 = vand.u32 %v153, 4294901760
    %v1365 = vsub.f32 %v153, %v1364
    %1366 = vmatpush.msra.mxu0 %v1365
    %v1367 = vand.u32 %v151, 4294901760
    %v1368 = vsub.f32 %v151, %v1367
    %1369 = vmatpush.msra.mxu0 %v1368
    %v1370 = vand.u32 %v149, 4294901760
    %v1371 = vsub.f32 %v149, %v1370
    %1372 = vmatpush.msra.mxu0 %v1371
    %v1373 = vand.u32 %v147, 4294901760
    %v1374 = vsub.f32 %v147, %v1373
    %1375 = vmatpush.msra.mxu0 %v1374
    %v1376 = vand.u32 %v145, 4294901760
    %v1377 = vsub.f32 %v145, %v1376
    %1378 = vmatpush.msra.mxu0 %v1377
    %v1379 = vand.u32 %v143, 4294901760
    %v1380 = vsub.f32 %v143, %v1379
    %1381 = vmatpush.msra.mxu0 %v1380
    %v1382 = vand.u32 %v141, 4294901760
    %v1383 = vsub.f32 %v141, %v1382
    %1384 = vmatpush.msra.mxu0 %v1383
    %v1385 = vand.u32 %v107, 4294901760
    %v1386 = vsub.f32 %v107, %v1385
    %1387 = vmatmul.f32.gmra.mxu0 %v1386
    %v1388 = vpop.f32.mrf.mxu0
    %v1389 = vadd.f32 %v1335, %v1388
    %1390 = vdwg.mxu0
    %v1391 = vand.u32 %v171, 4294901760
    %1392 = vmatpush.msra.mxu0 %v1391
    %v1393 = vand.u32 %v169, 4294901760
    %1394 = vmatpush.msra.mxu0 %v1393
    %v1395 = vand.u32 %v167, 4294901760
    %1396 = vmatpush.msra.mxu0 %v1395
    %v1397 = vand.u32 %v165, 4294901760
    %1398 = vmatpush.msra.mxu0 %v1397
    %v1399 = vand.u32 %v163, 4294901760
    %1400 = vmatpush.msra.mxu0 %v1399
    %v1401 = vand.u32 %v161, 4294901760
    %1402 = vmatpush.msra.mxu0 %v1401
    %v1403 = vand.u32 %v159, 4294901760
    %1404 = vmatpush.msra.mxu0 %v1403
    %v1405 = vand.u32 %v157, 4294901760
    %1406 = vmatpush.msra.mxu0 %v1405
    %v1407 = vand.u32 %v155, 4294901760
    %1408 = vmatpush.msra.mxu0 %v1407
    %v1409 = vand.u32 %v153, 4294901760
    %1410 = vmatpush.msra.mxu0 %v1409
    %v1411 = vand.u32 %v151, 4294901760
    %1412 = vmatpush.msra.mxu0 %v1411
    %v1413 = vand.u32 %v149, 4294901760
    %1414 = vmatpush.msra.mxu0 %v1413
    %v1415 = vand.u32 %v147, 4294901760
    %1416 = vmatpush.msra.mxu0 %v1415
    %v1417 = vand.u32 %v145, 4294901760
    %1418 = vmatpush.msra.mxu0 %v1417
    %v1419 = vand.u32 %v143, 4294901760
    %1420 = vmatpush.msra.mxu0 %v1419
    %v1421 = vand.u32 %v141, 4294901760
    %1422 = vmatpush.msra.mxu0 %v1421
    %v1423 = vand.u32 %v107, 4294901760
    %v1424 = vsub.f32 %v107, %v1423
    %v1425 = vand.u32 %v1424, 4294901760
    %1426 = vmatmul.f32.gmra.mxu0 %v1425
    %v1427 = vpop.f32.mrf.mxu0
    %v1428 = vadd.f32 %v1389, %v1427
    %1429 = vdwg.mxu0
    %v1430 = vand.u32 %v171, 4294901760
    %v1431 = vsub.f32 %v171, %v1430
    %v1432 = vand.u32 %v1431, 4294901760
    %1433 = vmatpush.msra.mxu0 %v1432
    %v1434 = vand.u32 %v169, 4294901760
    %v1435 = vsub.f32 %v169, %v1434
    %v1436 = vand.u32 %v1435, 4294901760
    %1437 = vmatpush.msra.mxu0 %v1436
    %v1438 = vand.u32 %v167, 4294901760
    %v1439 = vsub.f32 %v167, %v1438
    %v1440 = vand.u32 %v1439, 4294901760
    %1441 = vmatpush.msra.mxu0 %v1440
    %v1442 = vand.u32 %v165, 4294901760
    %v1443 = vsub.f32 %v165, %v1442
    %v1444 = vand.u32 %v1443, 4294901760
    %1445 = vmatpush.msra.mxu0 %v1444
    %v1446 = vand.u32 %v163, 4294901760
    %v1447 = vsub.f32 %v163, %v1446
    %v1448 = vand.u32 %v1447, 4294901760
    %1449 = vmatpush.msra.mxu0 %v1448
    %v1450 = vand.u32 %v161, 4294901760
    %v1451 = vsub.f32 %v161, %v1450
    %v1452 = vand.u32 %v1451, 4294901760
    %1453 = vmatpush.msra.mxu0 %v1452
    %v1454 = vand.u32 %v159, 4294901760
    %v1455 = vsub.f32 %v159, %v1454
    %v1456 = vand.u32 %v1455, 4294901760
    %1457 = vmatpush.msra.mxu0 %v1456
    %v1458 = vand.u32 %v157, 4294901760
    %v1459 = vsub.f32 %v157, %v1458
    %v1460 = vand.u32 %v1459, 4294901760
    %1461 = vmatpush.msra.mxu0 %v1460
    %v1462 = vand.u32 %v155, 4294901760
    %v1463 = vsub.f32 %v155, %v1462
    %v1464 = vand.u32 %v1463, 4294901760
    %1465 = vmatpush.msra.mxu0 %v1464
    %v1466 = vand.u32 %v153, 4294901760
    %v1467 = vsub.f32 %v153, %v1466
    %v1468 = vand.u32 %v1467, 4294901760
    %1469 = vmatpush.msra.mxu0 %v1468
    %v1470 = vand.u32 %v151, 4294901760
    %v1471 = vsub.f32 %v151, %v1470
    %v1472 = vand.u32 %v1471, 4294901760
    %1473 = vmatpush.msra.mxu0 %v1472
    %v1474 = vand.u32 %v149, 4294901760
    %v1475 = vsub.f32 %v149, %v1474
    %v1476 = vand.u32 %v1475, 4294901760
    %1477 = vmatpush.msra.mxu0 %v1476
    %v1478 = vand.u32 %v147, 4294901760
    %v1479 = vsub.f32 %v147, %v1478
    %v1480 = vand.u32 %v1479, 4294901760
    %1481 = vmatpush.msra.mxu0 %v1480
    %v1482 = vand.u32 %v145, 4294901760
    %v1483 = vsub.f32 %v145, %v1482
    %v1484 = vand.u32 %v1483, 4294901760
    %1485 = vmatpush.msra.mxu0 %v1484
    %v1486 = vand.u32 %v143, 4294901760
    %v1487 = vsub.f32 %v143, %v1486
    %v1488 = vand.u32 %v1487, 4294901760
    %1489 = vmatpush.msra.mxu0 %v1488
    %v1490 = vand.u32 %v141, 4294901760
    %v1491 = vsub.f32 %v141, %v1490
    %v1492 = vand.u32 %v1491, 4294901760
    %1493 = vmatpush.msra.mxu0 %v1492
    %v1494 = vand.u32 %v107, 4294901760
    %1495 = vmatmul.f32.gmra.mxu0 %v1494
    %v1496 = vpop.f32.mrf.mxu0
    %v1497 = vadd.f32 %v1428, %v1496
    %1498 = vdwg.mxu0
    %v1499 = vand.u32 %v171, 4294901760
    %1500 = vmatpush.msra.mxu0 %v1499
    %v1501 = vand.u32 %v169, 4294901760
    %1502 = vmatpush.msra.mxu0 %v1501
    %v1503 = vand.u32 %v167, 4294901760
    %1504 = vmatpush.msra.mxu0 %v1503
    %v1505 = vand.u32 %v165, 4294901760
    %1506 = vmatpush.msra.mxu0 %v1505
    %v1507 = vand.u32 %v163, 4294901760
    %1508 = vmatpush.msra.mxu0 %v1507
    %v1509 = vand.u32 %v161, 4294901760
    %1510 = vmatpush.msra.mxu0 %v1509
    %v1511 = vand.u32 %v159, 4294901760
    %1512 = vmatpush.msra.mxu0 %v1511
    %v1513 = vand.u32 %v157, 4294901760
    %1514 = vmatpush.msra.mxu0 %v1513
    %v1515 = vand.u32 %v155, 4294901760
    %1516 = vmatpush.msra.mxu0 %v1515
    %v1517 = vand.u32 %v153, 4294901760
    %1518 = vmatpush.msra.mxu0 %v1517
    %v1519 = vand.u32 %v151, 4294901760
    %1520 = vmatpush.msra.mxu0 %v1519
    %v1521 = vand.u32 %v149, 4294901760
    %1522 = vmatpush.msra.mxu0 %v1521
    %v1523 = vand.u32 %v147, 4294901760
    %1524 = vmatpush.msra.mxu0 %v1523
    %v1525 = vand.u32 %v145, 4294901760
    %1526 = vmatpush.msra.mxu0 %v1525
    %v1527 = vand.u32 %v143, 4294901760
    %1528 = vmatpush.msra.mxu0 %v1527
    %v1529 = vand.u32 %v141, 4294901760
    %1530 = vmatpush.msra.mxu0 %v1529
    %v1531 = vand.u32 %v107, 4294901760
    %1532 = vmatmul.f32.gmra.mxu0 %v1531
    %v1533 = vpop.f32.mrf.mxu0
    %v1534 = vadd.f32 %v1497, %v1533
    %1535 = vdwg.mxu0
    %1536 = vst [vmem:[#allocation7] sm:$0xff] %v852
    %1537 = vst [vmem:[#allocation7 + $0x8] sm:$0xff] %v1534
    // Predicated region
    $region18: #{tpu_custom_call.1} parent=1 // pred_check
      _
    $region19: #{tpu_custom_call.1} parent=1 // pred_check_branch
      %1539 = sbr.rel (0) target = $region21
    $region20: #{tpu_custom_call.1} parent=1 // pred_region
      %1541 = vsyncadd [#allocation4], 0
      %s1543 = sshll.u32 [#allocation7], 4
      %s1544 = int_to_ptr.vmem [resolvable:$true] %s1543
      %s1545 = sshll.u32 %s2, 4
      %s1546 = int_to_ptr.hbm [resolvable:$true] %s1545
      %1548 = dma.vmem_to_hbm [thread:$0]  %s1544, 256, %s1546, [#allocation4]
    $region21: #{tpu_custom_call.1} parent=1 // pred_fallthru
      _
    // Predicated region
    $region22: #{tpu_custom_call.1} parent=1 // pred_check
      _
    $region23: #{tpu_custom_call.1} parent=1 // pred_check_branch
      %1550 = sbr.rel (0) target = $region25
    $region24: #{tpu_custom_call.1} parent=1 // pred_region
      %1552 = dma.done [#allocation4], 256
    $region25: #{tpu_custom_call.1} parent=1 // pred_fallthru
      _
    %1553 = vsyncpa [#allocation3], 1
    %1554 = vsyncpa [#allocation6], 1
    %1555 = vsyncpa [#allocation4], 1

</llo_original>
